<compile_context>
chip_gen: v7x
topology: tpu7x:2x2x1
jax: 0.10.0
libtpu: 0.0.40
codegen_flags: <defaults>
</compile_context>

<pallas_src>
import functools

import jax
import jax.numpy as jnp
from jax.experimental import pallas as pl
from jax.experimental.pallas import tpu as pltpu


def _pchoose_kernel(bias_ref, q_ref, k_ref, wq_ref, bq_ref, wk_ref, bk_ref,
                    out_ref, *, num_heads, num_layers, scale_c, inv_temp_c):
    """One (batch-tile, q-tile) grid step.

    bias_ref: (1,) f32 in SMEM          learnable energy bias (traced)
    q_ref:    (Bt, Tq, D)               query block
    k_ref:    (Bt, S_kp, D)             pooled-key block (same for all q tiles)
    wq_ref/wk_ref: (L, D, D)            projection weights (y = x @ W + b)
    bq_ref/bk_ref: (L, D)               projection biases (lane-major)
    out_ref:  (Bt, H, Tq, S_kp)         head-major probabilities
    """
    Bt, Tq, D = q_ref.shape
    S_kp = k_ref.shape[1]
    H = num_heads
    Dh = D // H
    cdt = q_ref.dtype

    # Flatten (batch, time) so each Linear+ReLU layer is ONE wide MXU matmul
    # over Bt*T rows (leading-dim merge -> free reshape when Tq % 8 == 0).
    q = q_ref[...].reshape(Bt * Tq, D)
    k = k_ref[...].reshape(Bt * S_kp, D)
    for layer in range(num_layers):
        # f32 accumulation; bias-add + ReLU in f32, then cast back to the
        # compute dtype (v5e's VPU has no bf16 VALU).
        q = jnp.maximum(
            jnp.dot(q, wq_ref[layer], preferred_element_type=jnp.float32)
            + bq_ref[layer:layer + 1, :], 0.0).astype(cdt)
        k = jnp.maximum(
            jnp.dot(k, wk_ref[layer], preferred_element_type=jnp.float32)
            + bk_ref[layer:layer + 1, :], 0.0).astype(cdt)

    q = q.reshape(Bt, Tq, D)
    k = k.reshape(Bt, S_kp, D)

    # scale / temperature folded into one static constant; the learnable bias
    # stays traced (read once from SMEM, scaled by 1/temperature).
    bias_c = bias_ref[0].astype(jnp.float32) * inv_temp_c

    # Head-batched monotonic energy: contract over Dh only (no H× padded
    # FLOPs, no masks, no k replication).  Static unroll over heads keeps each
    # dot_general in the rank-3 / single-batch-dim form.  The per-head store
    # lands directly in the head-major output block (lane-dense whenever
    # S_kp is a multiple of 128, i.e. production sizes).
    for h in range(H):
        q_h = q[:, :, h * Dh:(h + 1) * Dh]          # (Bt, Tq,   Dh)
        k_h = k[:, :, h * Dh:(h + 1) * Dh]          # (Bt, S_kp, Dh)
        e_h = jax.lax.dot_general(
            q_h, k_h,
            dimension_numbers=(((2,), (2,)), ((0,), (0,))),
            preferred_element_type=jnp.float32)      # (Bt, Tq, S_kp)
        out_ref[:, h, :, :] = jax.nn.sigmoid(
            e_h * scale_c + bias_c).astype(out_ref.dtype)
    # TODO(synk): the PyTorch isNAN_isINF + file-logging branch is debug-only
    # side-effect code with no Pallas equivalent; intentionally omitted.


def _avg_pool1d_ceil(keys, ratio):
    """AvgPool1d(kernel=stride=ratio, ceil_mode=True) over the time axis.

    Kept as cheap XLA glue (keys-sized, hides behind the kernel); could be
    fused in-kernel to save one keys-sized HBM round-trip if it ever shows up.
    """
    B, S_k, D = keys.shape
    S_kp = -(-S_k // ratio)  # ceil
    pad = S_kp * ratio - S_k
    keys_p = jnp.pad(keys, ((0, 0), (0, pad), (0, 0)))
    sums = keys_p.reshape(B, S_kp, ratio, D).sum(axis=2)
    counts = jnp.minimum(ratio, S_k - jnp.arange(S_kp) * ratio).astype(keys.dtype)
    return sums / counts[None, :, None]


def _pick_batch_tile(batch, rows_per_sample, target_rows):
    """Largest divisor of `batch` keeping ~target_rows MXU rows per grid step."""
    bt = max(1, min(batch, max(1, target_rows // max(rows_per_sample, 1))))
    while batch % bt:
        bt -= 1
    return bt


def _pick_q_tile(s_q, bt, num_heads, s_kp, out_itemsize, budget_bytes):
    """Divisor of S_q (multiple of 8 when possible) bounding the out block."""
    def fits(tq):
        # double-buffered output block is the dominant per-step VMEM consumer
        return 2 * bt * num_heads * tq * s_kp * out_itemsize <= budget_bytes
    if fits(s_q):
        return s_q
    cands = [d for d in range(8, s_q, 8) if s_q % d == 0]
    for d in reversed(cands):
        if fits(d):
            return d
    return cands[0] if cands else s_q


def _const_spec(shape):
    """BlockSpec for a grid-invariant operand: single-buffered (no re-fetch
    overlap is ever needed, so the 2nd pipeline buffer is pure VMEM waste)."""
    ndim = len(shape)
    index_map = lambda b, t: (0,) * ndim
    try:
        return pl.BlockSpec(shape, index_map, pipeline_mode=pl.Buffered(1))
    except (TypeError, AttributeError):   # older jax without pipeline_mode
        return pl.BlockSpec(shape, index_map)


def pchoose_forward(seqs, keys, params, *, num_heads, monotonic_temperature,
                    pre_decision_ratio, energy_bias,
                    compute_dtype=jnp.bfloat16, out_dtype=None,
                    target_rows=512, vmem_limit_bytes=64 * 1024 * 1024):
    B, S_q, D = seqs.shape
    assert D % num_heads == 0, "model_dim must be divisible by num_heads"
    out_dtype = compute_dtype if out_dtype is None else out_dtype

    pooled = _avg_pool1d_ceil(keys, pre_decision_ratio)
    S_kp = pooled.shape[1]

    wq = params["wq"].astype(compute_dtype)     # (L, D, D), y = x @ W + b
    bq = params["bq"].astype(compute_dtype)     # (L, D)
    wk = params["wk"].astype(compute_dtype)
    bk = params["bk"].astype(compute_dtype)
    L = wq.shape[0]

    head_dim = D // num_heads
    inv_temp = 1.0 / float(monotonic_temperature)
    scale_c = float(head_dim ** -0.5) * inv_temp      # static: applied to q·kᵀ

    # Learnable bias stays traced (works under jit/grad; never stale).
    if energy_bias is None:
        bias_arr = jnp.zeros((1,), jnp.float32)
    else:
        bias_arr = jnp.asarray(energy_bias, jnp.float32).reshape((1,))

    out_itemsize = jnp.dtype(out_dtype).itemsize
    Bt = _pick_batch_tile(B, max(S_q, S_kp), target_rows)
    Tq = _pick_q_tile(S_q, Bt, num_heads, S_kp, out_itemsize,
                      budget_bytes=vmem_limit_bytes // 2)
    grid = (B // Bt, S_q // Tq)

    kern = functools.partial(
        _pchoose_kernel,
        num_heads=num_heads,
        num_layers=L,
        scale_c=scale_c,
        inv_temp_c=inv_temp,
    )

    return pl.pallas_call(
        kern,
        out_shape=jax.ShapeDtypeStruct((B, num_heads, S_q, S_kp), out_dtype),
        grid=grid,
        in_specs=[
            pl.BlockSpec(memory_space=pltpu.MemorySpace.SMEM),    # energy bias
            pl.BlockSpec((Bt, Tq, D), lambda b, t: (b, t, 0)),    # seqs tile
            pl.BlockSpec((Bt, S_kp, D), lambda b, t: (b, 0, 0)),  # pooled keys
            _const_spec((L, D, D)),                               # wq
            _const_spec((L, D)),                                  # bq
            _const_spec((L, D, D)),                               # wk
            _const_spec((L, D)),                                  # bk
        ],
        out_specs=pl.BlockSpec((Bt, num_heads, Tq, S_kp),
                               lambda b, t: (b, 0, t, 0)),
        compiler_params=pltpu.CompilerParams(
            dimension_semantics=("parallel", "parallel"),
            vmem_limit_bytes=vmem_limit_bytes),
    )(bias_arr, seqs.astype(compute_dtype), pooled.astype(compute_dtype),
      wq, bq, wk, bk)


def pchoose_reference(seqs, keys, params, *, num_heads, monotonic_temperature,
                      pre_decision_ratio, energy_bias):
    """Pure-JAX reference reproducing the PyTorch forward."""
    B, S_q, D = seqs.shape
    pooled = _avg_pool1d_ceil(keys, pre_decision_ratio)
    S_kp = pooled.shape[1]
    q, k = seqs, pooled
    for l in range(params["wq"].shape[0]):
        q = jax.nn.relu(q @ params["wq"][l] + params["bq"][l])
        k = jax.nn.relu(k @ params["wk"][l] + params["bk"][l])
    Dh = D // num_heads
    q = q.reshape(B, S_q, num_heads, Dh).transpose(0, 2, 1, 3)
    k = k.reshape(B, S_kp, num_heads, Dh).transpose(0, 2, 1, 3)
    energy = jnp.einsum("bhqd,bhkd->bhqk", q, k) * Dh ** -0.5
    if energy_bias is not None:
        energy = energy + energy_bias
    return jax.nn.sigmoid(energy / monotonic_temperature)


if __name__ == "__main__":
    # Module hyper-parameters (small, consistent with the PyTorch forward).
    model_dim = 32
    num_heads = 4
    energy_bias_value = -0.5
    monotonic_temperature = 0.2
    num_monotonic_energy_layers = 2
    pre_decision_ratio = 2

    B, S_q, S_k = 2, 8, 16

    root = jax.random.PRNGKey(0)
    k_seq, k_key, k0, k1, k2, k3 = jax.random.split(root, 6)

    seqs = jax.random.normal(k_seq, (B, S_q, model_dim), dtype=jnp.float32)
    keys = jax.random.normal(k_key, (B, S_k, model_dim), dtype=jnp.float32)

    L = num_monotonic_energy_layers
    # Deterministic synthetic parameters. Weights stored so that y = x @ W + b.
    params = {
        "wq": 0.2 * jax.random.normal(k0, (L, model_dim, model_dim), jnp.float32),
        "bq": 0.1 * jax.random.normal(k1, (L, model_dim), jnp.float32),
        "wk": 0.2 * jax.random.normal(k2, (L, model_dim, model_dim), jnp.float32),
        "bk": 0.1 * jax.random.normal(k3, (L, model_dim), jnp.float32),
    }
    energy_bias = jnp.full((1,), energy_bias_value, dtype=jnp.float32)

    # jit the wrapper so energy_bias flows in as a tracer (exercises the
    # SMEM-scalar path; production default is bf16, the demo pins f32 so the
    # 1e-5 reference check holds).
    fwd = jax.jit(functools.partial(
        pchoose_forward,
        num_heads=num_heads,
        monotonic_temperature=monotonic_temperature,
        pre_decision_ratio=pre_decision_ratio,
        compute_dtype=jnp.float32,
        out_dtype=jnp.float32,
    ))

    out = fwd(seqs, keys, params, energy_bias=energy_bias)
    out = jax.block_until_ready(out)

    ref = pchoose_reference(
        seqs, keys, params,
        num_heads=num_heads,
        monotonic_temperature=monotonic_temperature,
        pre_decision_ratio=pre_decision_ratio,
        energy_bias=energy_bias,
    )
    assert out.shape == (B, num_heads, S_q, S_k // pre_decision_ratio)
    assert jnp.allclose(out, ref, atol=1e-5, rtol=1e-5), "mismatch vs reference"

    print("KERNEL_OK")
</pallas_src>

<mosaic_0001>
module attributes {stable_mosaic.version = 11 : i64} {
  func.func @_pchoose_kernel(%arg0: i32, %arg1: i32, %arg2: memref<1xf32, #tpu.memory_space<smem>>, %arg3: memref<2x8x32xf32, #tpu.memory_space<vmem>>, %arg4: memref<2x8x32xf32, #tpu.memory_space<vmem>>, %arg5: memref<2x32x32xf32, #tpu.memory_space<vmem>>, %arg6: memref<2x32xf32, #tpu.memory_space<vmem>>, %arg7: memref<2x32x32xf32, #tpu.memory_space<vmem>>, %arg8: memref<2x32xf32, #tpu.memory_space<vmem>>, %arg9: memref<2x4x8x8xf32, #tpu.memory_space<vmem>>) attributes {dimension_semantics = [#tpu.dimension_semantics<parallel>, #tpu.dimension_semantics<parallel>], iteration_bounds = array<i64: 1, 1>, scalar_prefetch = 0 : i64, scratch_operands = 0 : i64, tpu.core_type = #tpu.core_type<tc>, window_params = [{transform_indices = @transform_0, window_bounds = array<i64: 1>}, {transform_indices = @transform_1, window_bounds = array<i64: 2, 8, 32>}, {transform_indices = @transform_2, window_bounds = array<i64: 2, 8, 32>}, {pipeline_mode = #tpu.pipeline_mode<synchronous>, transform_indices = @transform_3, window_bounds = array<i64: 2, 32, 32>}, {pipeline_mode = #tpu.pipeline_mode<synchronous>, transform_indices = @transform_4, window_bounds = array<i64: 2, 32>}, {pipeline_mode = #tpu.pipeline_mode<synchronous>, transform_indices = @transform_5, window_bounds = array<i64: 2, 32, 32>}, {pipeline_mode = #tpu.pipeline_mode<synchronous>, transform_indices = @transform_6, window_bounds = array<i64: 2, 32>}, {transform_indices = @transform_7, window_bounds = array<i64: 2, 4, 8, 8>}]} {
    %c0 = arith.constant 0 : index
    %c0_0 = arith.constant 0 : index
    %c0_1 = arith.constant 0 : index
    %0 = vector.load %arg3[%c0, %c0_0, %c0_1] : memref<2x8x32xf32, #tpu.memory_space<vmem>>, vector<2x8x32xf32>
    %1 = vector.shape_cast %0 : vector<2x8x32xf32> to vector<16x32xf32>
    %c0_2 = arith.constant 0 : index
    %c0_3 = arith.constant 0 : index
    %c0_4 = arith.constant 0 : index
    %2 = vector.load %arg4[%c0_2, %c0_3, %c0_4] : memref<2x8x32xf32, #tpu.memory_space<vmem>>, vector<2x8x32xf32>
    %3 = vector.shape_cast %2 : vector<2x8x32xf32> to vector<16x32xf32>
    %c0_5 = arith.constant 0 : index
    %c0_6 = arith.constant 0 : index
    %c0_7 = arith.constant 0 : index
    %4 = vector.load %arg5[%c0_5, %c0_6, %c0_7] : memref<2x32x32xf32, #tpu.memory_space<vmem>>, vector<1x32x32xf32>
    %5 = vector.shape_cast %4 : vector<1x32x32xf32> to vector<32x32xf32>
    %cst = arith.constant dense<0.000000e+00> : vector<16x32xf32>
    %6 = tpu.matmul %1, %5, %cst {dimension_numbers = #tpu.dot_dimension_numbers<[1], [0], [0], [1], [0, 0, 1, 1], [], []>} : vector<16x32xf32>, vector<32x32xf32>, vector<16x32xf32> -> vector<16x32xf32>
    %c0_8 = arith.constant 0 : index
    %c0_9 = arith.constant 0 : index
    %7 = vector.load %arg6[%c0_8, %c0_9] : memref<2x32xf32, #tpu.memory_space<vmem>>, vector<1x32xf32>
    %8 = vector.broadcast %7 : vector<1x32xf32> to vector<16x32xf32>
    %9 = arith.addf %6, %8 : vector<16x32xf32>
    %cst_10 = arith.constant 0.000000e+00 : f32
    %10 = vector.broadcast %cst_10 : f32 to vector<16x32xf32>
    %11 = arith.maximumf %9, %10 : vector<16x32xf32>
    %c0_11 = arith.constant 0 : index
    %c0_12 = arith.constant 0 : index
    %c0_13 = arith.constant 0 : index
    %12 = vector.load %arg7[%c0_11, %c0_12, %c0_13] : memref<2x32x32xf32, #tpu.memory_space<vmem>>, vector<1x32x32xf32>
    %13 = vector.shape_cast %12 : vector<1x32x32xf32> to vector<32x32xf32>
    %cst_14 = arith.constant dense<0.000000e+00> : vector<16x32xf32>
    %14 = tpu.matmul %3, %13, %cst_14 {dimension_numbers = #tpu.dot_dimension_numbers<[1], [0], [0], [1], [0, 0, 1, 1], [], []>} : vector<16x32xf32>, vector<32x32xf32>, vector<16x32xf32> -> vector<16x32xf32>
    %c0_15 = arith.constant 0 : index
    %c0_16 = arith.constant 0 : index
    %15 = vector.load %arg8[%c0_15, %c0_16] : memref<2x32xf32, #tpu.memory_space<vmem>>, vector<1x32xf32>
    %16 = vector.broadcast %15 : vector<1x32xf32> to vector<16x32xf32>
    %17 = arith.addf %14, %16 : vector<16x32xf32>
    %cst_17 = arith.constant 0.000000e+00 : f32
    %18 = vector.broadcast %cst_17 : f32 to vector<16x32xf32>
    %19 = arith.maximumf %17, %18 : vector<16x32xf32>
    %c1 = arith.constant 1 : index
    %c0_18 = arith.constant 0 : index
    %c0_19 = arith.constant 0 : index
    %20 = vector.load %arg5[%c1, %c0_18, %c0_19] : memref<2x32x32xf32, #tpu.memory_space<vmem>>, vector<1x32x32xf32>
    %21 = vector.shape_cast %20 : vector<1x32x32xf32> to vector<32x32xf32>
    %cst_20 = arith.constant dense<0.000000e+00> : vector<16x32xf32>
    %22 = tpu.matmul %11, %21, %cst_20 {dimension_numbers = #tpu.dot_dimension_numbers<[1], [0], [0], [1], [0, 0, 1, 1], [], []>} : vector<16x32xf32>, vector<32x32xf32>, vector<16x32xf32> -> vector<16x32xf32>
    %c1_21 = arith.constant 1 : index
    %c0_22 = arith.constant 0 : index
    %23 = vector.load %arg6[%c1_21, %c0_22] : memref<2x32xf32, #tpu.memory_space<vmem>>, vector<1x32xf32>
    %24 = vector.broadcast %23 : vector<1x32xf32> to vector<16x32xf32>
    %25 = arith.addf %22, %24 : vector<16x32xf32>
    %cst_23 = arith.constant 0.000000e+00 : f32
    %26 = vector.broadcast %cst_23 : f32 to vector<16x32xf32>
    %27 = arith.maximumf %25, %26 : vector<16x32xf32>
    %c1_24 = arith.constant 1 : index
    %c0_25 = arith.constant 0 : index
    %c0_26 = arith.constant 0 : index
    %28 = vector.load %arg7[%c1_24, %c0_25, %c0_26] : memref<2x32x32xf32, #tpu.memory_space<vmem>>, vector<1x32x32xf32>
    %29 = vector.shape_cast %28 : vector<1x32x32xf32> to vector<32x32xf32>
    %cst_27 = arith.constant dense<0.000000e+00> : vector<16x32xf32>
    %30 = tpu.matmul %19, %29, %cst_27 {dimension_numbers = #tpu.dot_dimension_numbers<[1], [0], [0], [1], [0, 0, 1, 1], [], []>} : vector<16x32xf32>, vector<32x32xf32>, vector<16x32xf32> -> vector<16x32xf32>
    %c1_28 = arith.constant 1 : index
    %c0_29 = arith.constant 0 : index
    %31 = vector.load %arg8[%c1_28, %c0_29] : memref<2x32xf32, #tpu.memory_space<vmem>>, vector<1x32xf32>
    %32 = vector.broadcast %31 : vector<1x32xf32> to vector<16x32xf32>
    %33 = arith.addf %30, %32 : vector<16x32xf32>
    %cst_30 = arith.constant 0.000000e+00 : f32
    %34 = vector.broadcast %cst_30 : f32 to vector<16x32xf32>
    %35 = arith.maximumf %33, %34 : vector<16x32xf32>
    %36 = vector.shape_cast %27 : vector<16x32xf32> to vector<2x8x32xf32>
    %37 = vector.shape_cast %35 : vector<16x32xf32> to vector<2x8x32xf32>
    %c0_31 = arith.constant 0 : index
    %38 = memref.load %arg2[%c0_31] : memref<1xf32, #tpu.memory_space<smem>>
    %cst_32 = arith.constant 5.000000e+00 : f32
    %39 = arith.mulf %38, %cst_32 : f32
    %40 = vector.extract_strided_slice %36 {offsets = [0, 0, 0], sizes = [2, 8, 8], strides = [1, 1, 1]} : vector<2x8x32xf32> to vector<2x8x8xf32>
    %41 = vector.extract_strided_slice %37 {offsets = [0, 0, 0], sizes = [2, 8, 8], strides = [1, 1, 1]} : vector<2x8x32xf32> to vector<2x8x8xf32>
    %cst_33 = arith.constant dense<0.000000e+00> : vector<2x8x8xf32>
    %42 = tpu.matmul %40, %41, %cst_33 {dimension_numbers = #tpu.dot_dimension_numbers<[2], [2], [1], [1], [0, 0, 0, 1, 1, 1], [0], [0]>} : vector<2x8x8xf32>, vector<2x8x8xf32>, vector<2x8x8xf32> -> vector<2x8x8xf32>
    %cst_34 = arith.constant 1.76776695 : f32
    %43 = vector.broadcast %cst_34 : f32 to vector<2x8x8xf32>
    %44 = arith.mulf %42, %43 : vector<2x8x8xf32>
    %45 = vector.broadcast %39 : f32 to vector<2x8x8xf32>
    %46 = arith.addf %44, %45 : vector<2x8x8xf32>
    %47 = arith.negf %46 : vector<2x8x8xf32>
    %48 = math.exp %47 : vector<2x8x8xf32>
    %cst_35 = arith.constant 1.000000e+00 : f32
    %49 = vector.broadcast %cst_35 : f32 to vector<2x8x8xf32>
    %50 = arith.addf %49, %48 : vector<2x8x8xf32>
    %51 = arith.divf %49, %50 : vector<2x8x8xf32>
    %c0_36 = arith.constant 0 : index
    %c0_37 = arith.constant 0 : index
    %c0_38 = arith.constant 0 : index
    %c0_39 = arith.constant 0 : index
    %52 = vector.load %arg9[%c0_36, %c0_37, %c0_38, %c0_39] : memref<2x4x8x8xf32, #tpu.memory_space<vmem>>, vector<2x1x8x8xf32>
    %53 = vector.shape_cast %52 : vector<2x1x8x8xf32> to vector<2x8x8xf32>
    %54 = vector.shape_cast %51 : vector<2x8x8xf32> to vector<2x1x8x8xf32>
    tpu.vector_store %arg9[%c0_36, %c0_37, %c0_38, %c0_39], %54 {strides = array<i32>} : memref<2x4x8x8xf32, #tpu.memory_space<vmem>>, vector<2x1x8x8xf32>,
    %55 = vector.extract_strided_slice %36 {offsets = [0, 0, 8], sizes = [2, 8, 8], strides = [1, 1, 1]} : vector<2x8x32xf32> to vector<2x8x8xf32>
    %56 = vector.extract_strided_slice %37 {offsets = [0, 0, 8], sizes = [2, 8, 8], strides = [1, 1, 1]} : vector<2x8x32xf32> to vector<2x8x8xf32>
    %cst_40 = arith.constant dense<0.000000e+00> : vector<2x8x8xf32>
    %57 = tpu.matmul %55, %56, %cst_40 {dimension_numbers = #tpu.dot_dimension_numbers<[2], [2], [1], [1], [0, 0, 0, 1, 1, 1], [0], [0]>} : vector<2x8x8xf32>, vector<2x8x8xf32>, vector<2x8x8xf32> -> vector<2x8x8xf32>
    %cst_41 = arith.constant 1.76776695 : f32
    %58 = vector.broadcast %cst_41 : f32 to vector<2x8x8xf32>
    %59 = arith.mulf %57, %58 : vector<2x8x8xf32>
    %60 = vector.broadcast %39 : f32 to vector<2x8x8xf32>
    %61 = arith.addf %59, %60 : vector<2x8x8xf32>
    %62 = arith.negf %61 : vector<2x8x8xf32>
    %63 = math.exp %62 : vector<2x8x8xf32>
    %cst_42 = arith.constant 1.000000e+00 : f32
    %64 = vector.broadcast %cst_42 : f32 to vector<2x8x8xf32>
    %65 = arith.addf %64, %63 : vector<2x8x8xf32>
    %66 = arith.divf %64, %65 : vector<2x8x8xf32>
    %c0_43 = arith.constant 0 : index
    %c1_44 = arith.constant 1 : index
    %c0_45 = arith.constant 0 : index
    %c0_46 = arith.constant 0 : index
    %67 = vector.load %arg9[%c0_43, %c1_44, %c0_45, %c0_46] : memref<2x4x8x8xf32, #tpu.memory_space<vmem>>, vector<2x1x8x8xf32>
    %68 = vector.shape_cast %67 : vector<2x1x8x8xf32> to vector<2x8x8xf32>
    %69 = vector.shape_cast %66 : vector<2x8x8xf32> to vector<2x1x8x8xf32>
    tpu.vector_store %arg9[%c0_43, %c1_44, %c0_45, %c0_46], %69 {strides = array<i32>} : memref<2x4x8x8xf32, #tpu.memory_space<vmem>>, vector<2x1x8x8xf32>,
    %70 = vector.extract_strided_slice %36 {offsets = [0, 0, 16], sizes = [2, 8, 8], strides = [1, 1, 1]} : vector<2x8x32xf32> to vector<2x8x8xf32>
    %71 = vector.extract_strided_slice %37 {offsets = [0, 0, 16], sizes = [2, 8, 8], strides = [1, 1, 1]} : vector<2x8x32xf32> to vector<2x8x8xf32>
    %cst_47 = arith.constant dense<0.000000e+00> : vector<2x8x8xf32>
    %72 = tpu.matmul %70, %71, %cst_47 {dimension_numbers = #tpu.dot_dimension_numbers<[2], [2], [1], [1], [0, 0, 0, 1, 1, 1], [0], [0]>} : vector<2x8x8xf32>, vector<2x8x8xf32>, vector<2x8x8xf32> -> vector<2x8x8xf32>
    %cst_48 = arith.constant 1.76776695 : f32
    %73 = vector.broadcast %cst_48 : f32 to vector<2x8x8xf32>
    %74 = arith.mulf %72, %73 : vector<2x8x8xf32>
    %75 = vector.broadcast %39 : f32 to vector<2x8x8xf32>
    %76 = arith.addf %74, %75 : vector<2x8x8xf32>
    %77 = arith.negf %76 : vector<2x8x8xf32>
    %78 = math.exp %77 : vector<2x8x8xf32>
    %cst_49 = arith.constant 1.000000e+00 : f32
    %79 = vector.broadcast %cst_49 : f32 to vector<2x8x8xf32>
    %80 = arith.addf %79, %78 : vector<2x8x8xf32>
    %81 = arith.divf %79, %80 : vector<2x8x8xf32>
    %c0_50 = arith.constant 0 : index
    %c2 = arith.constant 2 : index
    %c0_51 = arith.constant 0 : index
    %c0_52 = arith.constant 0 : index
    %82 = vector.load %arg9[%c0_50, %c2, %c0_51, %c0_52] : memref<2x4x8x8xf32, #tpu.memory_space<vmem>>, vector<2x1x8x8xf32>
    %83 = vector.shape_cast %82 : vector<2x1x8x8xf32> to vector<2x8x8xf32>
    %84 = vector.shape_cast %81 : vector<2x8x8xf32> to vector<2x1x8x8xf32>
    tpu.vector_store %arg9[%c0_50, %c2, %c0_51, %c0_52], %84 {strides = array<i32>} : memref<2x4x8x8xf32, #tpu.memory_space<vmem>>, vector<2x1x8x8xf32>,
    %85 = vector.extract_strided_slice %36 {offsets = [0, 0, 24], sizes = [2, 8, 8], strides = [1, 1, 1]} : vector<2x8x32xf32> to vector<2x8x8xf32>
    %86 = vector.extract_strided_slice %37 {offsets = [0, 0, 24], sizes = [2, 8, 8], strides = [1, 1, 1]} : vector<2x8x32xf32> to vector<2x8x8xf32>
    %cst_53 = arith.constant dense<0.000000e+00> : vector<2x8x8xf32>
    %87 = tpu.matmul %85, %86, %cst_53 {dimension_numbers = #tpu.dot_dimension_numbers<[2], [2], [1], [1], [0, 0, 0, 1, 1, 1], [0], [0]>} : vector<2x8x8xf32>, vector<2x8x8xf32>, vector<2x8x8xf32> -> vector<2x8x8xf32>
    %cst_54 = arith.constant 1.76776695 : f32
    %88 = vector.broadcast %cst_54 : f32 to vector<2x8x8xf32>
    %89 = arith.mulf %87, %88 : vector<2x8x8xf32>
    %90 = vector.broadcast %39 : f32 to vector<2x8x8xf32>
    %91 = arith.addf %89, %90 : vector<2x8x8xf32>
    %92 = arith.negf %91 : vector<2x8x8xf32>
    %93 = math.exp %92 : vector<2x8x8xf32>
    %cst_55 = arith.constant 1.000000e+00 : f32
    %94 = vector.broadcast %cst_55 : f32 to vector<2x8x8xf32>
    %95 = arith.addf %94, %93 : vector<2x8x8xf32>
    %96 = arith.divf %94, %95 : vector<2x8x8xf32>
    %c0_56 = arith.constant 0 : index
    %c3 = arith.constant 3 : index
    %c0_57 = arith.constant 0 : index
    %c0_58 = arith.constant 0 : index
    %97 = vector.load %arg9[%c0_56, %c3, %c0_57, %c0_58] : memref<2x4x8x8xf32, #tpu.memory_space<vmem>>, vector<2x1x8x8xf32>
    %98 = vector.shape_cast %97 : vector<2x1x8x8xf32> to vector<2x8x8xf32>
    %99 = vector.shape_cast %96 : vector<2x8x8xf32> to vector<2x1x8x8xf32>
    tpu.vector_store %arg9[%c0_56, %c3, %c0_57, %c0_58], %99 {strides = array<i32>} : memref<2x4x8x8xf32, #tpu.memory_space<vmem>>, vector<2x1x8x8xf32>,
    return
  }
  func.func @transform_0(%arg0: i32, %arg1: i32) -> i32 {
    %c0_i32 = arith.constant 0 : i32
    %c0_i32_0 = arith.constant 0 : i32
    return %c0_i32 : i32
  }
  func.func @transform_1(%arg0: i32, %arg1: i32) -> (i32, i32, i32) {
    %c0_i32 = arith.constant 0 : i32
    %c0_i32_0 = arith.constant 0 : i32
    return %arg0, %arg1, %c0_i32 : i32, i32, i32
  }
  func.func @transform_2(%arg0: i32, %arg1: i32) -> (i32, i32, i32) {
    %c0_i32 = arith.constant 0 : i32
    %c0_i32_0 = arith.constant 0 : i32
    %c0_i32_1 = arith.constant 0 : i32
    return %arg0, %c0_i32, %c0_i32_0 : i32, i32, i32
  }
  func.func @transform_3(%arg0: i32, %arg1: i32) -> (i32, i32, i32) {
    %c0_i32 = arith.constant 0 : i32
    %c0_i32_0 = arith.constant 0 : i32
    %c0_i32_1 = arith.constant 0 : i32
    %c0_i32_2 = arith.constant 0 : i32
    return %c0_i32, %c0_i32_0, %c0_i32_1 : i32, i32, i32
  }
  func.func @transform_4(%arg0: i32, %arg1: i32) -> (i32, i32) {
    %c0_i32 = arith.constant 0 : i32
    %c0_i32_0 = arith.constant 0 : i32
    %c0_i32_1 = arith.constant 0 : i32
    return %c0_i32, %c0_i32_0 : i32, i32
  }
  func.func @transform_5(%arg0: i32, %arg1: i32) -> (i32, i32, i32) {
    %c0_i32 = arith.constant 0 : i32
    %c0_i32_0 = arith.constant 0 : i32
    %c0_i32_1 = arith.constant 0 : i32
    %c0_i32_2 = arith.constant 0 : i32
    return %c0_i32, %c0_i32_0, %c0_i32_1 : i32, i32, i32
  }
  func.func @transform_6(%arg0: i32, %arg1: i32) -> (i32, i32) {
    %c0_i32 = arith.constant 0 : i32
    %c0_i32_0 = arith.constant 0 : i32
    %c0_i32_1 = arith.constant 0 : i32
    return %c0_i32, %c0_i32_0 : i32, i32
  }
  func.func @transform_7(%arg0: i32, %arg1: i32) -> (i32, i32, i32, i32) {
    %c0_i32 = arith.constant 0 : i32
    %c0_i32_0 = arith.constant 0 : i32
    %c0_i32_1 = arith.constant 0 : i32
    return %arg0, %c0_i32, %arg1, %c0_i32_0 : i32, i32, i32, i32
  }
}

</mosaic_0001>

<llo_original>
// kernel: pchoose_forward.1
$region0: #{pchoose_forward.1}
  #allocation0 [shape = 'u32[]', space=smem, size = 0x4, offset = 0x4, fixed_abs, tag = 'smem constant byte address 0x4 - core index']
  #allocation1 [shape = 'u32[144,128]{1,0:T(1,128)}', space=vmem, size = 0x12000, scoped, tag = 'internal scratch']
  #allocation2 [shape = 'f32[1]{0:T(128)S(6)}', space=smem, size = 0x200, scoped, tag = 'scoped memory for pchoose_forward.1']
  %s0 = inlined_call_operand.<no memory space> [shape: f32[1], index: 0, kind: input, shape index: {}]
  %s1 = inlined_call_operand.hbm [shape: f32[2,8,32], index: 1, kind: input, shape index: {}]
  %s2 = inlined_call_operand.hbm [shape: f32[2,8,32], index: 2, kind: input, shape index: {}]
  %s3 = inlined_call_operand.hbm [shape: f32[2,32,32], index: 3, kind: input, shape index: {}]
  %s4 = inlined_call_operand.hbm [shape: f32[2,32], index: 4, kind: input, shape index: {}]
  %s5 = inlined_call_operand.hbm [shape: f32[2,32,32], index: 5, kind: input, shape index: {}]
  %s6 = inlined_call_operand.hbm [shape: f32[2,32], index: 6, kind: input, shape index: {}]
  %s7 = inlined_call_operand.hbm [shape: f32[2,4,8,8], index: 7, kind: output, shape index: {}]
  %s8 = sld [smem:[#allocation0]]
  $region62: #{pchoose_forward.1} parent=0
    _
  %s10 = ssub.s32 1, %s8
  %s11 = scalar_select 0, %s10, %s8
  %12 = sst [smem:[#allocation2]] %s0
  $region1: #{pchoose_forward.1} parent=0
    #allocation3 [shape = 'u8[8192]{0}', space=vmem, size = 0x2000, scoped, tag = 'input window, operand 1, single buffered']
    #allocation4 [shape = 's32[1]{0}', space=sflag, size = 0x4, scoped, tag = 'scoped memory for pchoose_forward.1']
    #allocation5 [shape = 's32[1]{0}', space=sflag, size = 0x4, scoped, tag = 'scoped memory for pchoose_forward.1']
    #allocation6 [shape = 'u8[8192]{0}', space=vmem, size = 0x2000, scoped, tag = 'input window, operand 2, single buffered']
    #allocation7 [shape = 's32[1]{0}', space=sflag, size = 0x4, scoped, tag = 'scoped memory for pchoose_forward.1']
    #allocation8 [shape = 'u8[32768]{0}', space=vmem, size = 0x8000, scoped, tag = 'input window, operand 3, single buffered']
    #allocation9 [shape = 'u8[1024]{0}', space=vmem, size = 0x400, scoped, tag = 'input window, operand 4, single buffered']
    #allocation10 [shape = 's32[1]{0}', space=sflag, size = 0x4, scoped, tag = 'scoped memory for pchoose_forward.1']
    #allocation11 [shape = 'u8[32768]{0}', space=vmem, size = 0x8000, scoped, tag = 'input window, operand 5, single buffered']
    #allocation12 [shape = 'u8[1024]{0}', space=vmem, size = 0x400, scoped, tag = 'input window, operand 6, single buffered']
    #allocation13 [shape = 's32[1]{0}', space=sflag, size = 0x4, scoped, tag = 'scoped memory for pchoose_forward.1']
    #allocation14 [shape = 'u8[32768]{0}', space=vmem, size = 0x8000, scoped, tag = 'output window, operand 0, single buffered']
    %13 = vsyncpa [#allocation4], 0
    %14 = vsyncpa [#allocation7], 0
    %15 = vsyncpa [#allocation10], 0
    %16 = vsyncpa [#allocation13], 0
    %17 = vsyncpa [#allocation5], 0
    // Predicated region
    $region2: #{pchoose_forward.1} parent=1 // pred_check
      _
    $region3: #{pchoose_forward.1} parent=1 // pred_check_branch
      %19 = sbr.rel (0) target = $region5
    $region4: #{pchoose_forward.1} parent=1 // pred_region
      _
    $region5: #{pchoose_forward.1} parent=1 // pred_fallthru
      _
    // Predicated region
    $region6: #{pchoose_forward.1} parent=1 // pred_check
      _
    $region7: #{pchoose_forward.1} parent=1 // pred_check_branch
      %21 = sbr.rel (0) target = $region9
    $region8: #{pchoose_forward.1} parent=1 // pred_region
      %s23 = ssub.s32 256, 256
      %24 = vsyncadd [#allocation4], %s23
      %s25 = sshll.u32 [#allocation3], 4
      %s26 = int_to_ptr.vmem [resolvable:$true] %s25
      %31 = dma.hbm_to_vmem [thread:$0]  %s1, 256, %s26, [#allocation4], 128, 128, 8
    $region9: #{pchoose_forward.1} parent=1 // pred_fallthru
      _
    // Predicated region
    $region10: #{pchoose_forward.1} parent=1 // pred_check
      _
    $region11: #{pchoose_forward.1} parent=1 // pred_check_branch
      %33 = sbr.rel (0) target = $region13
    $region12: #{pchoose_forward.1} parent=1 // pred_region
      %s35 = ssub.s32 256, 256
      %36 = vsyncadd [#allocation7], %s35
      %s37 = sshll.u32 [#allocation6], 4
      %s38 = int_to_ptr.vmem [resolvable:$true] %s37
      %43 = dma.hbm_to_vmem [thread:$0]  %s2, 256, %s38, [#allocation7], 128, 128, 8
    $region13: #{pchoose_forward.1} parent=1 // pred_fallthru
      _
    // Predicated region
    $region14: #{pchoose_forward.1} parent=1 // pred_check
      _
    $region15: #{pchoose_forward.1} parent=1 // pred_check_branch
      %45 = sbr.rel (0) target = $region17
    $region16: #{pchoose_forward.1} parent=1 // pred_region
      %s47 = ssub.s32 1024, 1024
      %48 = vsyncadd [#allocation7], %s47
      %s49 = sshll.u32 [#allocation8], 4
      %s50 = int_to_ptr.vmem [resolvable:$true] %s49
      %55 = dma.hbm_to_vmem [thread:$0]  %s3, 1024, %s50, [#allocation7], 128, 128, 8
    $region17: #{pchoose_forward.1} parent=1 // pred_fallthru
      _
    // Predicated region
    $region18: #{pchoose_forward.1} parent=1 // pred_check
      _
    $region19: #{pchoose_forward.1} parent=1 // pred_check_branch
      %57 = sbr.rel (0) target = $region21
    $region20: #{pchoose_forward.1} parent=1 // pred_region
      %s59 = ssub.s32 32, 32
      %60 = vsyncadd [#allocation10], %s59
      %s62 = sshll.u32 [#allocation9], 4
      %s63 = int_to_ptr.vmem [resolvable:$true] %s62
      %65 = dma.hbm_to_vmem [thread:$0]  %s4, 32, %s63, [#allocation10]
    $region21: #{pchoose_forward.1} parent=1 // pred_fallthru
      _
    // Predicated region
    $region22: #{pchoose_forward.1} parent=1 // pred_check
      _
    $region23: #{pchoose_forward.1} parent=1 // pred_check_branch
      %67 = sbr.rel (0) target = $region25
    $region24: #{pchoose_forward.1} parent=1 // pred_region
      %s69 = ssub.s32 1024, 1024
      %70 = vsyncadd [#allocation10], %s69
      %s71 = sshll.u32 [#allocation11], 4
      %s72 = int_to_ptr.vmem [resolvable:$true] %s71
      %77 = dma.hbm_to_vmem [thread:$0]  %s5, 1024, %s72, [#allocation10], 128, 128, 8
    $region25: #{pchoose_forward.1} parent=1 // pred_fallthru
      _
    // Predicated region
    $region26: #{pchoose_forward.1} parent=1 // pred_check
      _
    $region27: #{pchoose_forward.1} parent=1 // pred_check_branch
      %79 = sbr.rel (0) target = $region29
    $region28: #{pchoose_forward.1} parent=1 // pred_region
      %s81 = ssub.s32 32, 32
      %82 = vsyncadd [#allocation13], %s81
      %s84 = sshll.u32 [#allocation12], 4
      %s85 = int_to_ptr.vmem [resolvable:$true] %s84
      %87 = dma.hbm_to_vmem [thread:$0]  %s6, 32, %s85, [#allocation13]
    $region29: #{pchoose_forward.1} parent=1 // pred_fallthru
      _
    // Predicated region
    $region30: #{pchoose_forward.1} parent=1 // pred_check
      _
    $region31: #{pchoose_forward.1} parent=1 // pred_check_branch
      %89 = sbr.rel (0) target = $region33
    $region32: #{pchoose_forward.1} parent=1 // pred_region
      %90 = dma.done [#allocation4], 256
    $region33: #{pchoose_forward.1} parent=1 // pred_fallthru
      _
    // Predicated region
    $region34: #{pchoose_forward.1} parent=1 // pred_check
      _
    $region35: #{pchoose_forward.1} parent=1 // pred_check_branch
      %92 = sbr.rel (0) target = $region37
    $region36: #{pchoose_forward.1} parent=1 // pred_region
      %93 = dma.done [#allocation7], 256
    $region37: #{pchoose_forward.1} parent=1 // pred_fallthru
      _
    // Predicated region
    $region38: #{pchoose_forward.1} parent=1 // pred_check
      _
    $region39: #{pchoose_forward.1} parent=1 // pred_check_branch
      %95 = sbr.rel (0) target = $region41
    $region40: #{pchoose_forward.1} parent=1 // pred_region
      %96 = dma.done [#allocation7], 1024
    $region41: #{pchoose_forward.1} parent=1 // pred_fallthru
      _
    // Predicated region
    $region42: #{pchoose_forward.1} parent=1 // pred_check
      _
    $region43: #{pchoose_forward.1} parent=1 // pred_check_branch
      %98 = sbr.rel (0) target = $region45
    $region44: #{pchoose_forward.1} parent=1 // pred_region
      %99 = dma.done [#allocation10], 32
    $region45: #{pchoose_forward.1} parent=1 // pred_fallthru
      _
    // Predicated region
    $region46: #{pchoose_forward.1} parent=1 // pred_check
      _
    $region47: #{pchoose_forward.1} parent=1 // pred_check_branch
      %101 = sbr.rel (0) target = $region49
    $region48: #{pchoose_forward.1} parent=1 // pred_region
      %102 = dma.done [#allocation10], 1024
    $region49: #{pchoose_forward.1} parent=1 // pred_fallthru
      _
    // Predicated region
    $region50: #{pchoose_forward.1} parent=1 // pred_check
      _
    $region51: #{pchoose_forward.1} parent=1 // pred_check_branch
      %104 = sbr.rel (0) target = $region53
    $region52: #{pchoose_forward.1} parent=1 // pred_region
      %105 = dma.done [#allocation13], 32
    $region53: #{pchoose_forward.1} parent=1 // pred_fallthru
      _
    %v106 = vld [vmem:[#allocation3] sm:$0xff]
    %v107 = vld [vmem:[#allocation3 + $0x8] sm:$0xff]
    %v108 = vld [vmem:[#allocation6] sm:$0xff]
    %v109 = vld [vmem:[#allocation6 + $0x8] sm:$0xff]
    %v110 = vld [vmem:[#allocation8] sm:$0xff]
    %v111 = vld [vmem:[#allocation8 + $0x8] sm:$0xff]
    %v112 = vld [vmem:[#allocation8 + $0x10] sm:$0xff]
    %v113 = vld [vmem:[#allocation8 + $0x18] sm:$0xff]
    %v114 = vld [vmem:[#allocation9] sm:$0x1]
    %v115 = vlaneseq
    %v116 = vshrl.u32 %v115, 7
    %v117 = vsub.s32 0, %v116
    %v118 = vrot.slane %v114, %v117
    %vm119 = vcmask 261120
    %v121 = vsel %vm119, %v106, 0
    %v124 = vsel %vm119, %v107, 0
    %126 = vmatprep.subr.mxu0 0.0
    %127 = vmatpush1.msra.mxu0 %v110
    %128 = vmatprep.subr.mxu0 0.0
    %129 = vmatpush1.msra.mxu0 %v111
    %130 = vmatprep.subr.mxu0 0.0
    %131 = vmatpush1.msra.mxu0 %v112
    %132 = vmatprep.subr.mxu0 0.0
    %133 = vmatpush1.msra.mxu0 %v113
    %134 = vmatprep.subr.mxu0 0.0
    %135 = vmatpush1.msra.mxu0 0.0
    %136 = vmatprep.subr.mxu0 0.0
    %137 = vmatpush1.msra.mxu0 0.0
    %138 = vmatprep.subr.mxu0 0.0
    %139 = vmatpush1.msra.mxu0 0.0
    %140 = vmatprep.subr.mxu0 0.0
    %141 = vmatpush1.msra.mxu0 0.0
    %142 = vmatprep.subr.mxu0 0.0
    %143 = vmatpush1.msra.mxu0 0.0
    %144 = vmatprep.subr.mxu0 0.0
    %145 = vmatpush1.msra.mxu0 0.0
    %146 = vmatprep.subr.mxu0 0.0
    %147 = vmatpush1.msra.mxu0 0.0
    %148 = vmatprep.subr.mxu0 0.0
    %149 = vmatpush1.msra.mxu0 0.0
    %150 = vmatprep.subr.mxu0 0.0
    %151 = vmatpush1.msra.mxu0 0.0
    %152 = vmatprep.subr.mxu0 0.0
    %153 = vmatpush1.msra.mxu0 0.0
    %154 = vmatprep.subr.mxu0 0.0
    %155 = vmatpush1.msra.mxu0 0.0
    %156 = vmatprep.subr.mxu0 0.0
    %157 = vmatpush1.msra.mxu0 0.0
    %158 = vmatprep.subr.mxu0 0.0
    %159 = vmatpush1.msra.mxu0 0.0
    %160 = vmatprep.subr.mxu0 0.0
    %161 = vmatpush1.msra.mxu0 0.0
    %162 = vmatprep.subr.mxu0 0.0
    %163 = vmatpush1.msra.mxu0 0.0
    %164 = vmatprep.subr.mxu0 0.0
    %165 = vmatpush1.msra.mxu0 0.0
    %166 = vmatprep.subr.mxu0 0.0
    %167 = vmatpush1.msra.mxu0 0.0
    %168 = vmatprep.subr.mxu0 0.0
    %169 = vmatpush1.msra.mxu0 0.0
    %170 = vmatprep.subr.mxu0 0.0
    %171 = vmatpush1.msra.mxu0 0.0
    %172 = vmatprep.subr.mxu0 0.0
    %173 = vmatpush1.msra.mxu0 0.0
    %174 = vmatprep.subr.mxu0 0.0
    %175 = vmatpush1.msra.mxu0 0.0
    %176 = vmatprep.subr.mxu0 0.0
    %177 = vmatpush1.msra.mxu0 0.0
    %178 = vmatprep.subr.mxu0 0.0
    %179 = vmatpush1.msra.mxu0 0.0
    %180 = vmatprep.subr.mxu0 0.0
    %181 = vmatpush1.msra.mxu0 0.0
    %182 = vmatprep.subr.mxu0 0.0
    %183 = vmatpush1.msra.mxu0 0.0
    %184 = vmatprep.subr.mxu0 0.0
    %185 = vmatpush1.msra.mxu0 0.0
    %186 = vmatprep.subr.mxu0 0.0
    %187 = vmatpush1.msra.mxu0 0.0
    %188 = vmatprep.subr.mxu0 0.0
    %189 = vmatpush1.msra.mxu0 0.0
    %190 = vmatprep.mubr.f32.mxu0 0.0
    %191 = vmatmul.mubr.f32.gmra.mrb[0].mxu0 %v121
    %v192 = vpop.f32.mrb[0].mxu0
    %v193 = vadd.f32 %v118, %v192
    %v194 = vpop.f32.mrb[0].mxu0
    %195 = vmatprep.mubr.f32.mxu0 0.0
    %196 = vmatmul.mubr.f32.gmra.mrb[0].mxu0 %v124
    %v197 = vpop.f32.mrb[0].mxu0
    %v198 = vadd.f32 %v118, %v197
    %v199 = vpop.f32.mrb[0].mxu0
    %200 = vdwg.mxu0
    %v201 = vmax.f32 %v193, 0.0
    %v202 = vmax.f32 %v198, 0.0
    %v203 = vld [vmem:[#allocation11] sm:$0xff]
    %v204 = vld [vmem:[#allocation11 + $0x8] sm:$0xff]
    %v205 = vld [vmem:[#allocation11 + $0x10] sm:$0xff]
    %v206 = vld [vmem:[#allocation11 + $0x18] sm:$0xff]
    %v207 = vld [vmem:[#allocation12] sm:$0x1]
    %v208 = vlaneseq
    %v209 = vshrl.u32 %v208, 7
    %v210 = vsub.s32 0, %v209
    %v211 = vrot.slane %v207, %v210
    %v213 = vsel %vm119, %v108, 0
    %v216 = vsel %vm119, %v109, 0
    %218 = vmatprep.subr.mxu0 0.0
    %219 = vmatpush1.msra.mxu0 %v203
    %220 = vmatprep.subr.mxu0 0.0
    %221 = vmatpush1.msra.mxu0 %v204
    %222 = vmatprep.subr.mxu0 0.0
    %223 = vmatpush1.msra.mxu0 %v205
    %224 = vmatprep.subr.mxu0 0.0
    %225 = vmatpush1.msra.mxu0 %v206
    %226 = vmatprep.subr.mxu0 0.0
    %227 = vmatpush1.msra.mxu0 0.0
    %228 = vmatprep.subr.mxu0 0.0
    %229 = vmatpush1.msra.mxu0 0.0
    %230 = vmatprep.subr.mxu0 0.0
    %231 = vmatpush1.msra.mxu0 0.0
    %232 = vmatprep.subr.mxu0 0.0
    %233 = vmatpush1.msra.mxu0 0.0
    %234 = vmatprep.subr.mxu0 0.0
    %235 = vmatpush1.msra.mxu0 0.0
    %236 = vmatprep.subr.mxu0 0.0
    %237 = vmatpush1.msra.mxu0 0.0
    %238 = vmatprep.subr.mxu0 0.0
    %239 = vmatpush1.msra.mxu0 0.0
    %240 = vmatprep.subr.mxu0 0.0
    %241 = vmatpush1.msra.mxu0 0.0
    %242 = vmatprep.subr.mxu0 0.0
    %243 = vmatpush1.msra.mxu0 0.0
    %244 = vmatprep.subr.mxu0 0.0
    %245 = vmatpush1.msra.mxu0 0.0
    %246 = vmatprep.subr.mxu0 0.0
    %247 = vmatpush1.msra.mxu0 0.0
    %248 = vmatprep.subr.mxu0 0.0
    %249 = vmatpush1.msra.mxu0 0.0
    %250 = vmatprep.subr.mxu0 0.0
    %251 = vmatpush1.msra.mxu0 0.0
    %252 = vmatprep.subr.mxu0 0.0
    %253 = vmatpush1.msra.mxu0 0.0
    %254 = vmatprep.subr.mxu0 0.0
    %255 = vmatpush1.msra.mxu0 0.0
    %256 = vmatprep.subr.mxu0 0.0
    %257 = vmatpush1.msra.mxu0 0.0
    %258 = vmatprep.subr.mxu0 0.0
    %259 = vmatpush1.msra.mxu0 0.0
    %260 = vmatprep.subr.mxu0 0.0
    %261 = vmatpush1.msra.mxu0 0.0
    %262 = vmatprep.subr.mxu0 0.0
    %263 = vmatpush1.msra.mxu0 0.0
    %264 = vmatprep.subr.mxu0 0.0
    %265 = vmatpush1.msra.mxu0 0.0
    %266 = vmatprep.subr.mxu0 0.0
    %267 = vmatpush1.msra.mxu0 0.0
    %268 = vmatprep.subr.mxu0 0.0
    %269 = vmatpush1.msra.mxu0 0.0
    %270 = vmatprep.subr.mxu0 0.0
    %271 = vmatpush1.msra.mxu0 0.0
    %272 = vmatprep.subr.mxu0 0.0
    %273 = vmatpush1.msra.mxu0 0.0
    %274 = vmatprep.subr.mxu0 0.0
    %275 = vmatpush1.msra.mxu0 0.0
    %276 = vmatprep.subr.mxu0 0.0
    %277 = vmatpush1.msra.mxu0 0.0
    %278 = vmatprep.subr.mxu0 0.0
    %279 = vmatpush1.msra.mxu0 0.0
    %280 = vmatprep.subr.mxu0 0.0
    %281 = vmatpush1.msra.mxu0 0.0
    %282 = vmatprep.mubr.f32.mxu0 0.0
    %283 = vmatmul.mubr.f32.gmra.mrb[0].mxu0 %v213
    %v284 = vpop.f32.mrb[0].mxu0
    %v285 = vadd.f32 %v211, %v284
    %v286 = vpop.f32.mrb[0].mxu0
    %287 = vmatprep.mubr.f32.mxu0 0.0
    %288 = vmatmul.mubr.f32.gmra.mrb[0].mxu0 %v216
    %v289 = vpop.f32.mrb[0].mxu0
    %v290 = vadd.f32 %v211, %v289
    %v291 = vpop.f32.mrb[0].mxu0
    %292 = vdwg.mxu0
    %v293 = vmax.f32 %v285, 0.0
    %v294 = vmax.f32 %v290, 0.0
    %s295 = scalar_lea.vmem [#allocation8], 32
    %v296 = vld [vmem:[%s295] sm:$0xff]
    %v297 = vld [vmem:[%s295 + $0x8] sm:$0xff]
    %v298 = vld [vmem:[%s295 + $0x10] sm:$0xff]
    %v299 = vld [vmem:[%s295 + $0x18] sm:$0xff]
    %v300 = vld [vmem:[#allocation9 + $0x1] sm:$0x1]
    %v301 = vlaneseq
    %v302 = vshrl.u32 %v301, 7
    %v303 = vsub.s32 0, %v302
    %v304 = vrot.slane %v300, %v303
    %v306 = vsel %vm119, %v201, 0
    %v309 = vsel %vm119, %v202, 0
    %311 = vmatprep.subr.mxu0 0.0
    %312 = vmatpush1.msra.mxu0 %v296
    %313 = vmatprep.subr.mxu0 0.0
    %314 = vmatpush1.msra.mxu0 %v297
    %315 = vmatprep.subr.mxu0 0.0
    %316 = vmatpush1.msra.mxu0 %v298
    %317 = vmatprep.subr.mxu0 0.0
    %318 = vmatpush1.msra.mxu0 %v299
    %319 = vmatprep.subr.mxu0 0.0
    %320 = vmatpush1.msra.mxu0 0.0
    %321 = vmatprep.subr.mxu0 0.0
    %322 = vmatpush1.msra.mxu0 0.0
    %323 = vmatprep.subr.mxu0 0.0
    %324 = vmatpush1.msra.mxu0 0.0
    %325 = vmatprep.subr.mxu0 0.0
    %326 = vmatpush1.msra.mxu0 0.0
    %327 = vmatprep.subr.mxu0 0.0
    %328 = vmatpush1.msra.mxu0 0.0
    %329 = vmatprep.subr.mxu0 0.0
    %330 = vmatpush1.msra.mxu0 0.0
    %331 = vmatprep.subr.mxu0 0.0
    %332 = vmatpush1.msra.mxu0 0.0
    %333 = vmatprep.subr.mxu0 0.0
    %334 = vmatpush1.msra.mxu0 0.0
    %335 = vmatprep.subr.mxu0 0.0
    %336 = vmatpush1.msra.mxu0 0.0
    %337 = vmatprep.subr.mxu0 0.0
    %338 = vmatpush1.msra.mxu0 0.0
    %339 = vmatprep.subr.mxu0 0.0
    %340 = vmatpush1.msra.mxu0 0.0
    %341 = vmatprep.subr.mxu0 0.0
    %342 = vmatpush1.msra.mxu0 0.0
    %343 = vmatprep.subr.mxu0 0.0
    %344 = vmatpush1.msra.mxu0 0.0
    %345 = vmatprep.subr.mxu0 0.0
    %346 = vmatpush1.msra.mxu0 0.0
    %347 = vmatprep.subr.mxu0 0.0
    %348 = vmatpush1.msra.mxu0 0.0
    %349 = vmatprep.subr.mxu0 0.0
    %350 = vmatpush1.msra.mxu0 0.0
    %351 = vmatprep.subr.mxu0 0.0
    %352 = vmatpush1.msra.mxu0 0.0
    %353 = vmatprep.subr.mxu0 0.0
    %354 = vmatpush1.msra.mxu0 0.0
    %355 = vmatprep.subr.mxu0 0.0
    %356 = vmatpush1.msra.mxu0 0.0
    %357 = vmatprep.subr.mxu0 0.0
    %358 = vmatpush1.msra.mxu0 0.0
    %359 = vmatprep.subr.mxu0 0.0
    %360 = vmatpush1.msra.mxu0 0.0
    %361 = vmatprep.subr.mxu0 0.0
    %362 = vmatpush1.msra.mxu0 0.0
    %363 = vmatprep.subr.mxu0 0.0
    %364 = vmatpush1.msra.mxu0 0.0
    %365 = vmatprep.subr.mxu0 0.0
    %366 = vmatpush1.msra.mxu0 0.0
    %367 = vmatprep.subr.mxu0 0.0
    %368 = vmatpush1.msra.mxu0 0.0
    %369 = vmatprep.subr.mxu0 0.0
    %370 = vmatpush1.msra.mxu0 0.0
    %371 = vmatprep.subr.mxu0 0.0
    %372 = vmatpush1.msra.mxu0 0.0
    %373 = vmatprep.subr.mxu0 0.0
    %374 = vmatpush1.msra.mxu0 0.0
    %375 = vmatprep.mubr.f32.mxu0 0.0
    %376 = vmatmul.mubr.f32.gmra.mrb[0].mxu0 %v306
    %v377 = vpop.f32.mrb[0].mxu0
    %v378 = vadd.f32 %v304, %v377
    %v379 = vpop.f32.mrb[0].mxu0
    %380 = vmatprep.mubr.f32.mxu0 0.0
    %381 = vmatmul.mubr.f32.gmra.mrb[0].mxu0 %v309
    %v382 = vpop.f32.mrb[0].mxu0
    %v383 = vadd.f32 %v304, %v382
    %v384 = vpop.f32.mrb[0].mxu0
    %385 = vdwg.mxu0
    %v386 = vmax.f32 %v378, 0.0
    %v387 = vmax.f32 %v383, 0.0
    %s388 = scalar_lea.vmem [#allocation11], 32
    %v389 = vld [vmem:[%s388] sm:$0xff]
    %v390 = vld [vmem:[%s388 + $0x8] sm:$0xff]
    %v391 = vld [vmem:[%s388 + $0x10] sm:$0xff]
    %v392 = vld [vmem:[%s388 + $0x18] sm:$0xff]
    %v393 = vld [vmem:[#allocation12 + $0x1] sm:$0x1]
    %v394 = vlaneseq
    %v395 = vshrl.u32 %v394, 7
    %v396 = vsub.s32 0, %v395
    %v397 = vrot.slane %v393, %v396
    %v399 = vsel %vm119, %v293, 0
    %v402 = vsel %vm119, %v294, 0
    %404 = vmatprep.subr.mxu0 0.0
    %405 = vmatpush1.msra.mxu0 %v389
    %406 = vmatprep.subr.mxu0 0.0
    %407 = vmatpush1.msra.mxu0 %v390
    %408 = vmatprep.subr.mxu0 0.0
    %409 = vmatpush1.msra.mxu0 %v391
    %410 = vmatprep.subr.mxu0 0.0
    %411 = vmatpush1.msra.mxu0 %v392
    %412 = vmatprep.subr.mxu0 0.0
    %413 = vmatpush1.msra.mxu0 0.0
    %414 = vmatprep.subr.mxu0 0.0
    %415 = vmatpush1.msra.mxu0 0.0
    %416 = vmatprep.subr.mxu0 0.0
    %417 = vmatpush1.msra.mxu0 0.0
    %418 = vmatprep.subr.mxu0 0.0
    %419 = vmatpush1.msra.mxu0 0.0
    %420 = vmatprep.subr.mxu0 0.0
    %421 = vmatpush1.msra.mxu0 0.0
    %422 = vmatprep.subr.mxu0 0.0
    %423 = vmatpush1.msra.mxu0 0.0
    %424 = vmatprep.subr.mxu0 0.0
    %425 = vmatpush1.msra.mxu0 0.0
    %426 = vmatprep.subr.mxu0 0.0
    %427 = vmatpush1.msra.mxu0 0.0
    %428 = vmatprep.subr.mxu0 0.0
    %429 = vmatpush1.msra.mxu0 0.0
    %430 = vmatprep.subr.mxu0 0.0
    %431 = vmatpush1.msra.mxu0 0.0
    %432 = vmatprep.subr.mxu0 0.0
    %433 = vmatpush1.msra.mxu0 0.0
    %434 = vmatprep.subr.mxu0 0.0
    %435 = vmatpush1.msra.mxu0 0.0
    %436 = vmatprep.subr.mxu0 0.0
    %437 = vmatpush1.msra.mxu0 0.0
    %438 = vmatprep.subr.mxu0 0.0
    %439 = vmatpush1.msra.mxu0 0.0
    %440 = vmatprep.subr.mxu0 0.0
    %441 = vmatpush1.msra.mxu0 0.0
    %442 = vmatprep.subr.mxu0 0.0
    %443 = vmatpush1.msra.mxu0 0.0
    %444 = vmatprep.subr.mxu0 0.0
    %445 = vmatpush1.msra.mxu0 0.0
    %446 = vmatprep.subr.mxu0 0.0
    %447 = vmatpush1.msra.mxu0 0.0
    %448 = vmatprep.subr.mxu0 0.0
    %449 = vmatpush1.msra.mxu0 0.0
    %450 = vmatprep.subr.mxu0 0.0
    %451 = vmatpush1.msra.mxu0 0.0
    %452 = vmatprep.subr.mxu0 0.0
    %453 = vmatpush1.msra.mxu0 0.0
    %454 = vmatprep.subr.mxu0 0.0
    %455 = vmatpush1.msra.mxu0 0.0
    %456 = vmatprep.subr.mxu0 0.0
    %457 = vmatpush1.msra.mxu0 0.0
    %458 = vmatprep.subr.mxu0 0.0
    %459 = vmatpush1.msra.mxu0 0.0
    %460 = vmatprep.subr.mxu0 0.0
    %461 = vmatpush1.msra.mxu0 0.0
    %462 = vmatprep.subr.mxu0 0.0
    %463 = vmatpush1.msra.mxu0 0.0
    %464 = vmatprep.subr.mxu0 0.0
    %465 = vmatpush1.msra.mxu0 0.0
    %466 = vmatprep.subr.mxu0 0.0
    %467 = vmatpush1.msra.mxu0 0.0
    %468 = vmatprep.mubr.f32.mxu0 0.0
    %469 = vmatmul.mubr.f32.gmra.mrb[0].mxu0 %v399
    %v470 = vpop.f32.mrb[0].mxu0
    %v471 = vadd.f32 %v397, %v470
    %v472 = vpop.f32.mrb[0].mxu0
    %473 = vmatprep.mubr.f32.mxu0 0.0
    %474 = vmatmul.mubr.f32.gmra.mrb[0].mxu0 %v402
    %v475 = vpop.f32.mrb[0].mxu0
    %v476 = vadd.f32 %v397, %v475
    %v477 = vpop.f32.mrb[0].mxu0
    %478 = vdwg.mxu0
    %v479 = vmax.f32 %v471, 0.0
    %v480 = vmax.f32 %v476, 0.0
    %s481 = sld [smem:[#allocation2]]
    %s482 = smul.f32 %s481, 5.0
    %vm483 = vcmask 64512
    %v485 = vsel %vm483, %v386, 0
    %v488 = vsel %vm483, %v479, 0
    %490 = vmatprep.subr.mxu0 0.0
    %491 = vmatpush1.xpose.msra.mxu0 %v488
    %492 = vmatprep.subr.mxu0 0.0
    %493 = vmatpush1.xpose.msra.mxu0 0.0
    %494 = vmatprep.subr.mxu0 0.0
    %495 = vmatpush1.xpose.msra.mxu0 0.0
    %496 = vmatprep.subr.mxu0 0.0
    %497 = vmatpush1.xpose.msra.mxu0 0.0
    %498 = vmatprep.subr.mxu0 0.0
    %499 = vmatpush1.xpose.msra.mxu0 0.0
    %500 = vmatprep.subr.mxu0 0.0
    %501 = vmatpush1.xpose.msra.mxu0 0.0
    %502 = vmatprep.subr.mxu0 0.0
    %503 = vmatpush1.xpose.msra.mxu0 0.0
    %504 = vmatprep.subr.mxu0 0.0
    %505 = vmatpush1.xpose.msra.mxu0 0.0
    %506 = vmatprep.subr.mxu0 0.0
    %507 = vmatpush1.xpose.msra.mxu0 0.0
    %508 = vmatprep.subr.mxu0 0.0
    %509 = vmatpush1.xpose.msra.mxu0 0.0
    %510 = vmatprep.subr.mxu0 0.0
    %511 = vmatpush1.xpose.msra.mxu0 0.0
    %512 = vmatprep.subr.mxu0 0.0
    %513 = vmatpush1.xpose.msra.mxu0 0.0
    %514 = vmatprep.subr.mxu0 0.0
    %515 = vmatpush1.xpose.msra.mxu0 0.0
    %516 = vmatprep.subr.mxu0 0.0
    %517 = vmatpush1.xpose.msra.mxu0 0.0
    %518 = vmatprep.subr.mxu0 0.0
    %519 = vmatpush1.xpose.msra.mxu0 0.0
    %520 = vmatprep.subr.mxu0 0.0
    %521 = vmatpush1.xpose.msra.mxu0 0.0
    %522 = vmatprep.subr.mxu0 0.0
    %523 = vmatpush1.xpose.msra.mxu0 0.0
    %524 = vmatprep.subr.mxu0 0.0
    %525 = vmatpush1.xpose.msra.mxu0 0.0
    %526 = vmatprep.subr.mxu0 0.0
    %527 = vmatpush1.xpose.msra.mxu0 0.0
    %528 = vmatprep.subr.mxu0 0.0
    %529 = vmatpush1.xpose.msra.mxu0 0.0
    %530 = vmatprep.subr.mxu0 0.0
    %531 = vmatpush1.xpose.msra.mxu0 0.0
    %532 = vmatprep.subr.mxu0 0.0
    %533 = vmatpush1.xpose.msra.mxu0 0.0
    %534 = vmatprep.subr.mxu0 0.0
    %535 = vmatpush1.xpose.msra.mxu0 0.0
    %536 = vmatprep.subr.mxu0 0.0
    %537 = vmatpush1.xpose.msra.mxu0 0.0
    %538 = vmatprep.subr.mxu0 0.0
    %539 = vmatpush1.xpose.msra.mxu0 0.0
    %540 = vmatprep.subr.mxu0 0.0
    %541 = vmatpush1.xpose.msra.mxu0 0.0
    %542 = vmatprep.subr.mxu0 0.0
    %543 = vmatpush1.xpose.msra.mxu0 0.0
    %544 = vmatprep.subr.mxu0 0.0
    %545 = vmatpush1.xpose.msra.mxu0 0.0
    %546 = vmatprep.subr.mxu0 0.0
    %547 = vmatpush1.xpose.msra.mxu0 0.0
    %548 = vmatprep.subr.mxu0 0.0
    %549 = vmatpush1.xpose.msra.mxu0 0.0
    %550 = vmatprep.subr.mxu0 0.0
    %551 = vmatpush1.xpose.msra.mxu0 0.0
    %552 = vmatprep.subr.mxu0 0.0
    %553 = vmatpush1.xpose.msra.mxu0 0.0
    %554 = vmatprep.mubr.f32.mxu0 0.0
    %555 = vmatmul.mubr.f32.gmra.mrb[0].mxu0 %v485
    %v556 = vpop.f32.mrb[0].mxu0
    %v557 = vadd.f32 0.0, %v556
    %v558 = vpop.f32.mrb[0].mxu0
    %559 = vdwg.mxu0
    %v561 = vsel %vm483, %v387, 0
    %v564 = vsel %vm483, %v480, 0
    %566 = vmatprep.subr.mxu0 0.0
    %567 = vmatpush1.xpose.msra.mxu0 %v564
    %568 = vmatprep.subr.mxu0 0.0
    %569 = vmatpush1.xpose.msra.mxu0 0.0
    %570 = vmatprep.subr.mxu0 0.0
    %571 = vmatpush1.xpose.msra.mxu0 0.0
    %572 = vmatprep.subr.mxu0 0.0
    %573 = vmatpush1.xpose.msra.mxu0 0.0
    %574 = vmatprep.subr.mxu0 0.0
    %575 = vmatpush1.xpose.msra.mxu0 0.0
    %576 = vmatprep.subr.mxu0 0.0
    %577 = vmatpush1.xpose.msra.mxu0 0.0
    %578 = vmatprep.subr.mxu0 0.0
    %579 = vmatpush1.xpose.msra.mxu0 0.0
    %580 = vmatprep.subr.mxu0 0.0
    %581 = vmatpush1.xpose.msra.mxu0 0.0
    %582 = vmatprep.subr.mxu0 0.0
    %583 = vmatpush1.xpose.msra.mxu0 0.0
    %584 = vmatprep.subr.mxu0 0.0
    %585 = vmatpush1.xpose.msra.mxu0 0.0
    %586 = vmatprep.subr.mxu0 0.0
    %587 = vmatpush1.xpose.msra.mxu0 0.0
    %588 = vmatprep.subr.mxu0 0.0
    %589 = vmatpush1.xpose.msra.mxu0 0.0
    %590 = vmatprep.subr.mxu0 0.0
    %591 = vmatpush1.xpose.msra.mxu0 0.0
    %592 = vmatprep.subr.mxu0 0.0
    %593 = vmatpush1.xpose.msra.mxu0 0.0
    %594 = vmatprep.subr.mxu0 0.0
    %595 = vmatpush1.xpose.msra.mxu0 0.0
    %596 = vmatprep.subr.mxu0 0.0
    %597 = vmatpush1.xpose.msra.mxu0 0.0
    %598 = vmatprep.subr.mxu0 0.0
    %599 = vmatpush1.xpose.msra.mxu0 0.0
    %600 = vmatprep.subr.mxu0 0.0
    %601 = vmatpush1.xpose.msra.mxu0 0.0
    %602 = vmatprep.subr.mxu0 0.0
    %603 = vmatpush1.xpose.msra.mxu0 0.0
    %604 = vmatprep.subr.mxu0 0.0
    %605 = vmatpush1.xpose.msra.mxu0 0.0
    %606 = vmatprep.subr.mxu0 0.0
    %607 = vmatpush1.xpose.msra.mxu0 0.0
    %608 = vmatprep.subr.mxu0 0.0
    %609 = vmatpush1.xpose.msra.mxu0 0.0
    %610 = vmatprep.subr.mxu0 0.0
    %611 = vmatpush1.xpose.msra.mxu0 0.0
    %612 = vmatprep.subr.mxu0 0.0
    %613 = vmatpush1.xpose.msra.mxu0 0.0
    %614 = vmatprep.subr.mxu0 0.0
    %615 = vmatpush1.xpose.msra.mxu0 0.0
    %616 = vmatprep.subr.mxu0 0.0
    %617 = vmatpush1.xpose.msra.mxu0 0.0
    %618 = vmatprep.subr.mxu0 0.0
    %619 = vmatpush1.xpose.msra.mxu0 0.0
    %620 = vmatprep.subr.mxu0 0.0
    %621 = vmatpush1.xpose.msra.mxu0 0.0
    %622 = vmatprep.subr.mxu0 0.0
    %623 = vmatpush1.xpose.msra.mxu0 0.0
    %624 = vmatprep.subr.mxu0 0.0
    %625 = vmatpush1.xpose.msra.mxu0 0.0
    %626 = vmatprep.subr.mxu0 0.0
    %627 = vmatpush1.xpose.msra.mxu0 0.0
    %628 = vmatprep.subr.mxu0 0.0
    %629 = vmatpush1.xpose.msra.mxu0 0.0
    %630 = vmatprep.mubr.f32.mxu0 0.0
    %631 = vmatmul.mubr.f32.gmra.mrb[0].mxu0 %v561
    %v632 = vpop.f32.mrb[0].mxu0
    %v633 = vadd.f32 0.0, %v632
    %v634 = vpop.f32.mrb[0].mxu0
    %635 = vdwg.mxu0
    %v636 = vmul.f32 %v557, 1.767767
    %v637 = vmul.f32 %v633, 1.767767
    %v638 = vstv %s482
    %v639 = vadd.f32 %v636, %v638
    %v640 = vadd.f32 %v637, %v638
    %v641 = vxor.u32 %v639, 2147483648
    %v642 = vxor.u32 %v640, 2147483648
    %v643 = vmul.f32 %v641, 1.442695
    %v644 = vpow.pop %v643
    %v645 = vmul.f32 %v642, 1.442695
    %v646 = vpow.pop %v645
    %v647 = vadd.f32 %v644, 1.0
    %v648 = vadd.f32 %v646, 1.0
    %v649 = vrcp.pop %v647
    %v650 = vmul.f32 1.0, %v649
    %v651 = vrcp.pop %v648
    %v652 = vmul.f32 1.0, %v651
    %653 = vst.msk [vmem:[#allocation14] sm:$0xff] %vm483, %v650
    %654 = vst.msk [vmem:[#allocation14 + $0x20] sm:$0xff] %vm483, %v652
    %655 = vrot.lane.b32.xlu0 %v386, 120
    %v656 = vpop.permute.xlu0 %655
    %657 = vrot.lane.b32.xlu0 %v479, 120
    %v658 = vpop.permute.xlu0 %657
    %v659 = vsel %vm483, %v656, 0
    %v661 = vsel %vm483, %v658, 0
    %663 = vmatprep.subr.mxu0 0.0
    %664 = vmatpush1.xpose.msra.mxu0 %v661
    %665 = vmatprep.subr.mxu0 0.0
    %666 = vmatpush1.xpose.msra.mxu0 0.0
    %667 = vmatprep.subr.mxu0 0.0
    %668 = vmatpush1.xpose.msra.mxu0 0.0
    %669 = vmatprep.subr.mxu0 0.0
    %670 = vmatpush1.xpose.msra.mxu0 0.0
    %671 = vmatprep.subr.mxu0 0.0
    %672 = vmatpush1.xpose.msra.mxu0 0.0
    %673 = vmatprep.subr.mxu0 0.0
    %674 = vmatpush1.xpose.msra.mxu0 0.0
    %675 = vmatprep.subr.mxu0 0.0
    %676 = vmatpush1.xpose.msra.mxu0 0.0
    %677 = vmatprep.subr.mxu0 0.0
    %678 = vmatpush1.xpose.msra.mxu0 0.0
    %679 = vmatprep.subr.mxu0 0.0
    %680 = vmatpush1.xpose.msra.mxu0 0.0
    %681 = vmatprep.subr.mxu0 0.0
    %682 = vmatpush1.xpose.msra.mxu0 0.0
    %683 = vmatprep.subr.mxu0 0.0
    %684 = vmatpush1.xpose.msra.mxu0 0.0
    %685 = vmatprep.subr.mxu0 0.0
    %686 = vmatpush1.xpose.msra.mxu0 0.0
    %687 = vmatprep.subr.mxu0 0.0
    %688 = vmatpush1.xpose.msra.mxu0 0.0
    %689 = vmatprep.subr.mxu0 0.0
    %690 = vmatpush1.xpose.msra.mxu0 0.0
    %691 = vmatprep.subr.mxu0 0.0
    %692 = vmatpush1.xpose.msra.mxu0 0.0
    %693 = vmatprep.subr.mxu0 0.0
    %694 = vmatpush1.xpose.msra.mxu0 0.0
    %695 = vmatprep.subr.mxu0 0.0
    %696 = vmatpush1.xpose.msra.mxu0 0.0
    %697 = vmatprep.subr.mxu0 0.0
    %698 = vmatpush1.xpose.msra.mxu0 0.0
    %699 = vmatprep.subr.mxu0 0.0
    %700 = vmatpush1.xpose.msra.mxu0 0.0
    %701 = vmatprep.subr.mxu0 0.0
    %702 = vmatpush1.xpose.msra.mxu0 0.0
    %703 = vmatprep.subr.mxu0 0.0
    %704 = vmatpush1.xpose.msra.mxu0 0.0
    %705 = vmatprep.subr.mxu0 0.0
    %706 = vmatpush1.xpose.msra.mxu0 0.0
    %707 = vmatprep.subr.mxu0 0.0
    %708 = vmatpush1.xpose.msra.mxu0 0.0
    %709 = vmatprep.subr.mxu0 0.0
    %710 = vmatpush1.xpose.msra.mxu0 0.0
    %711 = vmatprep.subr.mxu0 0.0
    %712 = vmatpush1.xpose.msra.mxu0 0.0
    %713 = vmatprep.subr.mxu0 0.0
    %714 = vmatpush1.xpose.msra.mxu0 0.0
    %715 = vmatprep.subr.mxu0 0.0
    %716 = vmatpush1.xpose.msra.mxu0 0.0
    %717 = vmatprep.subr.mxu0 0.0
    %718 = vmatpush1.xpose.msra.mxu0 0.0
    %719 = vmatprep.subr.mxu0 0.0
    %720 = vmatpush1.xpose.msra.mxu0 0.0
    %721 = vmatprep.subr.mxu0 0.0
    %722 = vmatpush1.xpose.msra.mxu0 0.0
    %723 = vmatprep.subr.mxu0 0.0
    %724 = vmatpush1.xpose.msra.mxu0 0.0
    %725 = vmatprep.subr.mxu0 0.0
    %726 = vmatpush1.xpose.msra.mxu0 0.0
    %727 = vmatprep.mubr.f32.mxu0 0.0
    %728 = vmatmul.mubr.f32.gmra.mrb[0].mxu0 %v659
    %v729 = vpop.f32.mrb[0].mxu0
    %v730 = vadd.f32 0.0, %v729
    %v731 = vpop.f32.mrb[0].mxu0
    %732 = vdwg.mxu0
    %733 = vrot.lane.b32.xlu0 %v387, 120
    %v734 = vpop.permute.xlu0 %733
    %735 = vrot.lane.b32.xlu0 %v480, 120
    %v736 = vpop.permute.xlu0 %735
    %v737 = vsel %vm483, %v734, 0
    %v739 = vsel %vm483, %v736, 0
    %741 = vmatprep.subr.mxu0 0.0
    %742 = vmatpush1.xpose.msra.mxu0 %v739
    %743 = vmatprep.subr.mxu0 0.0
    %744 = vmatpush1.xpose.msra.mxu0 0.0
    %745 = vmatprep.subr.mxu0 0.0
    %746 = vmatpush1.xpose.msra.mxu0 0.0
    %747 = vmatprep.subr.mxu0 0.0
    %748 = vmatpush1.xpose.msra.mxu0 0.0
    %749 = vmatprep.subr.mxu0 0.0
    %750 = vmatpush1.xpose.msra.mxu0 0.0
    %751 = vmatprep.subr.mxu0 0.0
    %752 = vmatpush1.xpose.msra.mxu0 0.0
    %753 = vmatprep.subr.mxu0 0.0
    %754 = vmatpush1.xpose.msra.mxu0 0.0
    %755 = vmatprep.subr.mxu0 0.0
    %756 = vmatpush1.xpose.msra.mxu0 0.0
    %757 = vmatprep.subr.mxu0 0.0
    %758 = vmatpush1.xpose.msra.mxu0 0.0
    %759 = vmatprep.subr.mxu0 0.0
    %760 = vmatpush1.xpose.msra.mxu0 0.0
    %761 = vmatprep.subr.mxu0 0.0
    %762 = vmatpush1.xpose.msra.mxu0 0.0
    %763 = vmatprep.subr.mxu0 0.0
    %764 = vmatpush1.xpose.msra.mxu0 0.0
    %765 = vmatprep.subr.mxu0 0.0
    %766 = vmatpush1.xpose.msra.mxu0 0.0
    %767 = vmatprep.subr.mxu0 0.0
    %768 = vmatpush1.xpose.msra.mxu0 0.0
    %769 = vmatprep.subr.mxu0 0.0
    %770 = vmatpush1.xpose.msra.mxu0 0.0
    %771 = vmatprep.subr.mxu0 0.0
    %772 = vmatpush1.xpose.msra.mxu0 0.0
    %773 = vmatprep.subr.mxu0 0.0
    %774 = vmatpush1.xpose.msra.mxu0 0.0
    %775 = vmatprep.subr.mxu0 0.0
    %776 = vmatpush1.xpose.msra.mxu0 0.0
    %777 = vmatprep.subr.mxu0 0.0
    %778 = vmatpush1.xpose.msra.mxu0 0.0
    %779 = vmatprep.subr.mxu0 0.0
    %780 = vmatpush1.xpose.msra.mxu0 0.0
    %781 = vmatprep.subr.mxu0 0.0
    %782 = vmatpush1.xpose.msra.mxu0 0.0
    %783 = vmatprep.subr.mxu0 0.0
    %784 = vmatpush1.xpose.msra.mxu0 0.0
    %785 = vmatprep.subr.mxu0 0.0
    %786 = vmatpush1.xpose.msra.mxu0 0.0
    %787 = vmatprep.subr.mxu0 0.0
    %788 = vmatpush1.xpose.msra.mxu0 0.0
    %789 = vmatprep.subr.mxu0 0.0
    %790 = vmatpush1.xpose.msra.mxu0 0.0
    %791 = vmatprep.subr.mxu0 0.0
    %792 = vmatpush1.xpose.msra.mxu0 0.0
    %793 = vmatprep.subr.mxu0 0.0
    %794 = vmatpush1.xpose.msra.mxu0 0.0
    %795 = vmatprep.subr.mxu0 0.0
    %796 = vmatpush1.xpose.msra.mxu0 0.0
    %797 = vmatprep.subr.mxu0 0.0
    %798 = vmatpush1.xpose.msra.mxu0 0.0
    %799 = vmatprep.subr.mxu0 0.0
    %800 = vmatpush1.xpose.msra.mxu0 0.0
    %801 = vmatprep.subr.mxu0 0.0
    %802 = vmatpush1.xpose.msra.mxu0 0.0
    %803 = vmatprep.subr.mxu0 0.0
    %804 = vmatpush1.xpose.msra.mxu0 0.0
    %805 = vmatprep.mubr.f32.mxu0 0.0
    %806 = vmatmul.mubr.f32.gmra.mrb[0].mxu0 %v737
    %v807 = vpop.f32.mrb[0].mxu0
    %v808 = vadd.f32 0.0, %v807
    %v809 = vpop.f32.mrb[0].mxu0
    %810 = vdwg.mxu0
    %v811 = vmul.f32 %v730, 1.767767
    %v812 = vmul.f32 %v808, 1.767767
    %v813 = vadd.f32 %v811, %v638
    %v814 = vadd.f32 %v812, %v638
    %v815 = vxor.u32 %v813, 2147483648
    %v816 = vxor.u32 %v814, 2147483648
    %v817 = vmul.f32 %v815, 1.442695
    %v818 = vpow.pop %v817
    %v819 = vmul.f32 %v816, 1.442695
    %v820 = vpow.pop %v819
    %v821 = vadd.f32 %v818, 1.0
    %v822 = vadd.f32 %v820, 1.0
    %v823 = vrcp.pop %v821
    %v824 = vmul.f32 1.0, %v823
    %v825 = vrcp.pop %v822
    %v826 = vmul.f32 1.0, %v825
    %s827 = scalar_lea.vmem [#allocation14], 8
    %828 = vst.msk [vmem:[%s827] sm:$0xff] %vm483, %v824
    %829 = vst.msk [vmem:[%s827 + $0x20] sm:$0xff] %vm483, %v826
    %830 = vrot.lane.b32.xlu0 %v386, 112
    %v831 = vpop.permute.xlu0 %830
    %832 = vrot.lane.b32.xlu0 %v479, 112
    %v833 = vpop.permute.xlu0 %832
    %v834 = vsel %vm483, %v831, 0
    %v836 = vsel %vm483, %v833, 0
    %838 = vmatprep.subr.mxu0 0.0
    %839 = vmatpush1.xpose.msra.mxu0 %v836
    %840 = vmatprep.subr.mxu0 0.0
    %841 = vmatpush1.xpose.msra.mxu0 0.0
    %842 = vmatprep.subr.mxu0 0.0
    %843 = vmatpush1.xpose.msra.mxu0 0.0
    %844 = vmatprep.subr.mxu0 0.0
    %845 = vmatpush1.xpose.msra.mxu0 0.0
    %846 = vmatprep.subr.mxu0 0.0
    %847 = vmatpush1.xpose.msra.mxu0 0.0
    %848 = vmatprep.subr.mxu0 0.0
    %849 = vmatpush1.xpose.msra.mxu0 0.0
    %850 = vmatprep.subr.mxu0 0.0
    %851 = vmatpush1.xpose.msra.mxu0 0.0
    %852 = vmatprep.subr.mxu0 0.0
    %853 = vmatpush1.xpose.msra.mxu0 0.0
    %854 = vmatprep.subr.mxu0 0.0
    %855 = vmatpush1.xpose.msra.mxu0 0.0
    %856 = vmatprep.subr.mxu0 0.0
    %857 = vmatpush1.xpose.msra.mxu0 0.0
    %858 = vmatprep.subr.mxu0 0.0
    %859 = vmatpush1.xpose.msra.mxu0 0.0
    %860 = vmatprep.subr.mxu0 0.0
    %861 = vmatpush1.xpose.msra.mxu0 0.0
    %862 = vmatprep.subr.mxu0 0.0
    %863 = vmatpush1.xpose.msra.mxu0 0.0
    %864 = vmatprep.subr.mxu0 0.0
    %865 = vmatpush1.xpose.msra.mxu0 0.0
    %866 = vmatprep.subr.mxu0 0.0
    %867 = vmatpush1.xpose.msra.mxu0 0.0
    %868 = vmatprep.subr.mxu0 0.0
    %869 = vmatpush1.xpose.msra.mxu0 0.0
    %870 = vmatprep.subr.mxu0 0.0
    %871 = vmatpush1.xpose.msra.mxu0 0.0
    %872 = vmatprep.subr.mxu0 0.0
    %873 = vmatpush1.xpose.msra.mxu0 0.0
    %874 = vmatprep.subr.mxu0 0.0
    %875 = vmatpush1.xpose.msra.mxu0 0.0
    %876 = vmatprep.subr.mxu0 0.0
    %877 = vmatpush1.xpose.msra.mxu0 0.0
    %878 = vmatprep.subr.mxu0 0.0
    %879 = vmatpush1.xpose.msra.mxu0 0.0
    %880 = vmatprep.subr.mxu0 0.0
    %881 = vmatpush1.xpose.msra.mxu0 0.0
    %882 = vmatprep.subr.mxu0 0.0
    %883 = vmatpush1.xpose.msra.mxu0 0.0
    %884 = vmatprep.subr.mxu0 0.0
    %885 = vmatpush1.xpose.msra.mxu0 0.0
    %886 = vmatprep.subr.mxu0 0.0
    %887 = vmatpush1.xpose.msra.mxu0 0.0
    %888 = vmatprep.subr.mxu0 0.0
    %889 = vmatpush1.xpose.msra.mxu0 0.0
    %890 = vmatprep.subr.mxu0 0.0
    %891 = vmatpush1.xpose.msra.mxu0 0.0
    %892 = vmatprep.subr.mxu0 0.0
    %893 = vmatpush1.xpose.msra.mxu0 0.0
    %894 = vmatprep.subr.mxu0 0.0
    %895 = vmatpush1.xpose.msra.mxu0 0.0
    %896 = vmatprep.subr.mxu0 0.0
    %897 = vmatpush1.xpose.msra.mxu0 0.0
    %898 = vmatprep.subr.mxu0 0.0
    %899 = vmatpush1.xpose.msra.mxu0 0.0
    %900 = vmatprep.subr.mxu0 0.0
    %901 = vmatpush1.xpose.msra.mxu0 0.0
    %902 = vmatprep.mubr.f32.mxu0 0.0
    %903 = vmatmul.mubr.f32.gmra.mrb[0].mxu0 %v834
    %v904 = vpop.f32.mrb[0].mxu0
    %v905 = vadd.f32 0.0, %v904
    %v906 = vpop.f32.mrb[0].mxu0
    %907 = vdwg.mxu0
    %908 = vrot.lane.b32.xlu0 %v387, 112
    %v909 = vpop.permute.xlu0 %908
    %910 = vrot.lane.b32.xlu0 %v480, 112
    %v911 = vpop.permute.xlu0 %910
    %v912 = vsel %vm483, %v909, 0
    %v914 = vsel %vm483, %v911, 0
    %916 = vmatprep.subr.mxu0 0.0
    %917 = vmatpush1.xpose.msra.mxu0 %v914
    %918 = vmatprep.subr.mxu0 0.0
    %919 = vmatpush1.xpose.msra.mxu0 0.0
    %920 = vmatprep.subr.mxu0 0.0
    %921 = vmatpush1.xpose.msra.mxu0 0.0
    %922 = vmatprep.subr.mxu0 0.0
    %923 = vmatpush1.xpose.msra.mxu0 0.0
    %924 = vmatprep.subr.mxu0 0.0
    %925 = vmatpush1.xpose.msra.mxu0 0.0
    %926 = vmatprep.subr.mxu0 0.0
    %927 = vmatpush1.xpose.msra.mxu0 0.0
    %928 = vmatprep.subr.mxu0 0.0
    %929 = vmatpush1.xpose.msra.mxu0 0.0
    %930 = vmatprep.subr.mxu0 0.0
    %931 = vmatpush1.xpose.msra.mxu0 0.0
    %932 = vmatprep.subr.mxu0 0.0
    %933 = vmatpush1.xpose.msra.mxu0 0.0
    %934 = vmatprep.subr.mxu0 0.0
    %935 = vmatpush1.xpose.msra.mxu0 0.0
    %936 = vmatprep.subr.mxu0 0.0
    %937 = vmatpush1.xpose.msra.mxu0 0.0
    %938 = vmatprep.subr.mxu0 0.0
    %939 = vmatpush1.xpose.msra.mxu0 0.0
    %940 = vmatprep.subr.mxu0 0.0
    %941 = vmatpush1.xpose.msra.mxu0 0.0
    %942 = vmatprep.subr.mxu0 0.0
    %943 = vmatpush1.xpose.msra.mxu0 0.0
    %944 = vmatprep.subr.mxu0 0.0
    %945 = vmatpush1.xpose.msra.mxu0 0.0
    %946 = vmatprep.subr.mxu0 0.0
    %947 = vmatpush1.xpose.msra.mxu0 0.0
    %948 = vmatprep.subr.mxu0 0.0
    %949 = vmatpush1.xpose.msra.mxu0 0.0
    %950 = vmatprep.subr.mxu0 0.0
    %951 = vmatpush1.xpose.msra.mxu0 0.0
    %952 = vmatprep.subr.mxu0 0.0
    %953 = vmatpush1.xpose.msra.mxu0 0.0
    %954 = vmatprep.subr.mxu0 0.0
    %955 = vmatpush1.xpose.msra.mxu0 0.0
    %956 = vmatprep.subr.mxu0 0.0
    %957 = vmatpush1.xpose.msra.mxu0 0.0
    %958 = vmatprep.subr.mxu0 0.0
    %959 = vmatpush1.xpose.msra.mxu0 0.0
    %960 = vmatprep.subr.mxu0 0.0
    %961 = vmatpush1.xpose.msra.mxu0 0.0
    %962 = vmatprep.subr.mxu0 0.0
    %963 = vmatpush1.xpose.msra.mxu0 0.0
    %964 = vmatprep.subr.mxu0 0.0
    %965 = vmatpush1.xpose.msra.mxu0 0.0
    %966 = vmatprep.subr.mxu0 0.0
    %967 = vmatpush1.xpose.msra.mxu0 0.0
    %968 = vmatprep.subr.mxu0 0.0
    %969 = vmatpush1.xpose.msra.mxu0 0.0
    %970 = vmatprep.subr.mxu0 0.0
    %971 = vmatpush1.xpose.msra.mxu0 0.0
    %972 = vmatprep.subr.mxu0 0.0
    %973 = vmatpush1.xpose.msra.mxu0 0.0
    %974 = vmatprep.subr.mxu0 0.0
    %975 = vmatpush1.xpose.msra.mxu0 0.0
    %976 = vmatprep.subr.mxu0 0.0
    %977 = vmatpush1.xpose.msra.mxu0 0.0
    %978 = vmatprep.subr.mxu0 0.0
    %979 = vmatpush1.xpose.msra.mxu0 0.0
    %980 = vmatprep.mubr.f32.mxu0 0.0
    %981 = vmatmul.mubr.f32.gmra.mrb[0].mxu0 %v912
    %v982 = vpop.f32.mrb[0].mxu0
    %v983 = vadd.f32 0.0, %v982
    %v984 = vpop.f32.mrb[0].mxu0
    %985 = vdwg.mxu0
    %v986 = vmul.f32 %v905, 1.767767
    %v987 = vmul.f32 %v983, 1.767767
    %v988 = vadd.f32 %v986, %v638
    %v989 = vadd.f32 %v987, %v638
    %v990 = vxor.u32 %v988, 2147483648
    %v991 = vxor.u32 %v989, 2147483648
    %v992 = vmul.f32 %v990, 1.442695
    %v993 = vpow.pop %v992
    %v994 = vmul.f32 %v991, 1.442695
    %v995 = vpow.pop %v994
    %v996 = vadd.f32 %v993, 1.0
    %v997 = vadd.f32 %v995, 1.0
    %v998 = vrcp.pop %v996
    %v999 = vmul.f32 1.0, %v998
    %v1000 = vrcp.pop %v997
    %v1001 = vmul.f32 1.0, %v1000
    %s1002 = scalar_lea.vmem [#allocation14], 16
    %1003 = vst.msk [vmem:[%s1002] sm:$0xff] %vm483, %v999
    %1004 = vst.msk [vmem:[%s1002 + $0x20] sm:$0xff] %vm483, %v1001
    %1005 = vrot.lane.b32.xlu0 %v386, 104
    %v1006 = vpop.permute.xlu0 %1005
    %1007 = vrot.lane.b32.xlu0 %v479, 104
    %v1008 = vpop.permute.xlu0 %1007
    %v1009 = vsel %vm483, %v1006, 0
    %v1011 = vsel %vm483, %v1008, 0
    %1013 = vmatprep.subr.mxu0 0.0
    %1014 = vmatpush1.xpose.msra.mxu0 %v1011
    %1015 = vmatprep.subr.mxu0 0.0
    %1016 = vmatpush1.xpose.msra.mxu0 0.0
    %1017 = vmatprep.subr.mxu0 0.0
    %1018 = vmatpush1.xpose.msra.mxu0 0.0
    %1019 = vmatprep.subr.mxu0 0.0
    %1020 = vmatpush1.xpose.msra.mxu0 0.0
    %1021 = vmatprep.subr.mxu0 0.0
    %1022 = vmatpush1.xpose.msra.mxu0 0.0
    %1023 = vmatprep.subr.mxu0 0.0
    %1024 = vmatpush1.xpose.msra.mxu0 0.0
    %1025 = vmatprep.subr.mxu0 0.0
    %1026 = vmatpush1.xpose.msra.mxu0 0.0
    %1027 = vmatprep.subr.mxu0 0.0
    %1028 = vmatpush1.xpose.msra.mxu0 0.0
    %1029 = vmatprep.subr.mxu0 0.0
    %1030 = vmatpush1.xpose.msra.mxu0 0.0
    %1031 = vmatprep.subr.mxu0 0.0
    %1032 = vmatpush1.xpose.msra.mxu0 0.0
    %1033 = vmatprep.subr.mxu0 0.0
    %1034 = vmatpush1.xpose.msra.mxu0 0.0
    %1035 = vmatprep.subr.mxu0 0.0
    %1036 = vmatpush1.xpose.msra.mxu0 0.0
    %1037 = vmatprep.subr.mxu0 0.0
    %1038 = vmatpush1.xpose.msra.mxu0 0.0
    %1039 = vmatprep.subr.mxu0 0.0
    %1040 = vmatpush1.xpose.msra.mxu0 0.0
    %1041 = vmatprep.subr.mxu0 0.0
    %1042 = vmatpush1.xpose.msra.mxu0 0.0
    %1043 = vmatprep.subr.mxu0 0.0
    %1044 = vmatpush1.xpose.msra.mxu0 0.0
    %1045 = vmatprep.subr.mxu0 0.0
    %1046 = vmatpush1.xpose.msra.mxu0 0.0
    %1047 = vmatprep.subr.mxu0 0.0
    %1048 = vmatpush1.xpose.msra.mxu0 0.0
    %1049 = vmatprep.subr.mxu0 0.0
    %1050 = vmatpush1.xpose.msra.mxu0 0.0
    %1051 = vmatprep.subr.mxu0 0.0
    %1052 = vmatpush1.xpose.msra.mxu0 0.0
    %1053 = vmatprep.subr.mxu0 0.0
    %1054 = vmatpush1.xpose.msra.mxu0 0.0
    %1055 = vmatprep.subr.mxu0 0.0
    %1056 = vmatpush1.xpose.msra.mxu0 0.0
    %1057 = vmatprep.subr.mxu0 0.0
    %1058 = vmatpush1.xpose.msra.mxu0 0.0
    %1059 = vmatprep.subr.mxu0 0.0
    %1060 = vmatpush1.xpose.msra.mxu0 0.0
    %1061 = vmatprep.subr.mxu0 0.0
    %1062 = vmatpush1.xpose.msra.mxu0 0.0
    %1063 = vmatprep.subr.mxu0 0.0
    %1064 = vmatpush1.xpose.msra.mxu0 0.0
    %1065 = vmatprep.subr.mxu0 0.0
    %1066 = vmatpush1.xpose.msra.mxu0 0.0
    %1067 = vmatprep.subr.mxu0 0.0
    %1068 = vmatpush1.xpose.msra.mxu0 0.0
    %1069 = vmatprep.subr.mxu0 0.0
    %1070 = vmatpush1.xpose.msra.mxu0 0.0
    %1071 = vmatprep.subr.mxu0 0.0
    %1072 = vmatpush1.xpose.msra.mxu0 0.0
    %1073 = vmatprep.subr.mxu0 0.0
    %1074 = vmatpush1.xpose.msra.mxu0 0.0
    %1075 = vmatprep.subr.mxu0 0.0
    %1076 = vmatpush1.xpose.msra.mxu0 0.0
    %1077 = vmatprep.mubr.f32.mxu0 0.0
    %1078 = vmatmul.mubr.f32.gmra.mrb[0].mxu0 %v1009
    %v1079 = vpop.f32.mrb[0].mxu0
    %v1080 = vadd.f32 0.0, %v1079
    %v1081 = vpop.f32.mrb[0].mxu0
    %1082 = vdwg.mxu0
    %1083 = vrot.lane.b32.xlu0 %v387, 104
    %v1084 = vpop.permute.xlu0 %1083
    %1085 = vrot.lane.b32.xlu0 %v480, 104
    %v1086 = vpop.permute.xlu0 %1085
    %v1087 = vsel %vm483, %v1084, 0
    %v1089 = vsel %vm483, %v1086, 0
    %1091 = vmatprep.subr.mxu0 0.0
    %1092 = vmatpush1.xpose.msra.mxu0 %v1089
    %1093 = vmatprep.subr.mxu0 0.0
    %1094 = vmatpush1.xpose.msra.mxu0 0.0
    %1095 = vmatprep.subr.mxu0 0.0
    %1096 = vmatpush1.xpose.msra.mxu0 0.0
    %1097 = vmatprep.subr.mxu0 0.0
    %1098 = vmatpush1.xpose.msra.mxu0 0.0
    %1099 = vmatprep.subr.mxu0 0.0
    %1100 = vmatpush1.xpose.msra.mxu0 0.0
    %1101 = vmatprep.subr.mxu0 0.0
    %1102 = vmatpush1.xpose.msra.mxu0 0.0
    %1103 = vmatprep.subr.mxu0 0.0
    %1104 = vmatpush1.xpose.msra.mxu0 0.0
    %1105 = vmatprep.subr.mxu0 0.0
    %1106 = vmatpush1.xpose.msra.mxu0 0.0
    %1107 = vmatprep.subr.mxu0 0.0
    %1108 = vmatpush1.xpose.msra.mxu0 0.0
    %1109 = vmatprep.subr.mxu0 0.0
    %1110 = vmatpush1.xpose.msra.mxu0 0.0
    %1111 = vmatprep.subr.mxu0 0.0
    %1112 = vmatpush1.xpose.msra.mxu0 0.0
    %1113 = vmatprep.subr.mxu0 0.0
    %1114 = vmatpush1.xpose.msra.mxu0 0.0
    %1115 = vmatprep.subr.mxu0 0.0
    %1116 = vmatpush1.xpose.msra.mxu0 0.0
    %1117 = vmatprep.subr.mxu0 0.0
    %1118 = vmatpush1.xpose.msra.mxu0 0.0
    %1119 = vmatprep.subr.mxu0 0.0
    %1120 = vmatpush1.xpose.msra.mxu0 0.0
    %1121 = vmatprep.subr.mxu0 0.0
    %1122 = vmatpush1.xpose.msra.mxu0 0.0
    %1123 = vmatprep.subr.mxu0 0.0
    %1124 = vmatpush1.xpose.msra.mxu0 0.0
    %1125 = vmatprep.subr.mxu0 0.0
    %1126 = vmatpush1.xpose.msra.mxu0 0.0
    %1127 = vmatprep.subr.mxu0 0.0
    %1128 = vmatpush1.xpose.msra.mxu0 0.0
    %1129 = vmatprep.subr.mxu0 0.0
    %1130 = vmatpush1.xpose.msra.mxu0 0.0
    %1131 = vmatprep.subr.mxu0 0.0
    %1132 = vmatpush1.xpose.msra.mxu0 0.0
    %1133 = vmatprep.subr.mxu0 0.0
    %1134 = vmatpush1.xpose.msra.mxu0 0.0
    %1135 = vmatprep.subr.mxu0 0.0
    %1136 = vmatpush1.xpose.msra.mxu0 0.0
    %1137 = vmatprep.subr.mxu0 0.0
    %1138 = vmatpush1.xpose.msra.mxu0 0.0
    %1139 = vmatprep.subr.mxu0 0.0
    %1140 = vmatpush1.xpose.msra.mxu0 0.0
    %1141 = vmatprep.subr.mxu0 0.0
    %1142 = vmatpush1.xpose.msra.mxu0 0.0
    %1143 = vmatprep.subr.mxu0 0.0
    %1144 = vmatpush1.xpose.msra.mxu0 0.0
    %1145 = vmatprep.subr.mxu0 0.0
    %1146 = vmatpush1.xpose.msra.mxu0 0.0
    %1147 = vmatprep.subr.mxu0 0.0
    %1148 = vmatpush1.xpose.msra.mxu0 0.0
    %1149 = vmatprep.subr.mxu0 0.0
    %1150 = vmatpush1.xpose.msra.mxu0 0.0
    %1151 = vmatprep.subr.mxu0 0.0
    %1152 = vmatpush1.xpose.msra.mxu0 0.0
    %1153 = vmatprep.subr.mxu0 0.0
    %1154 = vmatpush1.xpose.msra.mxu0 0.0
    %1155 = vmatprep.mubr.f32.mxu0 0.0
    %1156 = vmatmul.mubr.f32.gmra.mrb[0].mxu0 %v1087
    %v1157 = vpop.f32.mrb[0].mxu0
    %v1158 = vadd.f32 0.0, %v1157
    %v1159 = vpop.f32.mrb[0].mxu0
    %1160 = vdwg.mxu0
    %v1161 = vmul.f32 %v1080, 1.767767
    %v1162 = vmul.f32 %v1158, 1.767767
    %v1163 = vadd.f32 %v1161, %v638
    %v1164 = vadd.f32 %v1162, %v638
    %v1165 = vxor.u32 %v1163, 2147483648
    %v1166 = vxor.u32 %v1164, 2147483648
    %v1167 = vmul.f32 %v1165, 1.442695
    %v1168 = vpow.pop %v1167
    %v1169 = vmul.f32 %v1166, 1.442695
    %v1170 = vpow.pop %v1169
    %v1171 = vadd.f32 %v1168, 1.0
    %v1172 = vadd.f32 %v1170, 1.0
    %v1173 = vrcp.pop %v1171
    %v1174 = vmul.f32 1.0, %v1173
    %v1175 = vrcp.pop %v1172
    %v1176 = vmul.f32 1.0, %v1175
    %s1177 = scalar_lea.vmem [#allocation14], 24
    %1178 = vst.msk [vmem:[%s1177] sm:$0xff] %vm483, %v1174
    %1179 = vst.msk [vmem:[%s1177 + $0x20] sm:$0xff] %vm483, %v1176
    // Predicated region
    $region54: #{pchoose_forward.1} parent=1 // pred_check
      _
    $region55: #{pchoose_forward.1} parent=1 // pred_check_branch
      %1181 = sbr.rel (0) target = $region57
    $region56: #{pchoose_forward.1} parent=1 // pred_region
      %s1183 = ssub.s32 1024, 1024
      %1184 = vsyncadd [#allocation5], %s1183
      %s1185 = sshll.u32 [#allocation14], 4
      %s1186 = int_to_ptr.vmem [resolvable:$true] %s1185
      %1191 = dma.vmem_to_hbm [thread:$0]  %s1186, 1024, %s7, [#allocation5], 128, 128, 8
    $region57: #{pchoose_forward.1} parent=1 // pred_fallthru
      _
    // Predicated region
    $region58: #{pchoose_forward.1} parent=1 // pred_check
      _
    $region59: #{pchoose_forward.1} parent=1 // pred_check_branch
      %1193 = sbr.rel (0) target = $region61
    $region60: #{pchoose_forward.1} parent=1 // pred_region
      %1194 = dma.done [#allocation5], 1024
    $region61: #{pchoose_forward.1} parent=1 // pred_fallthru
      _
    %1195 = vsyncpa [#allocation4], 1
    %1196 = vsyncpa [#allocation7], 1
    %1197 = vsyncpa [#allocation10], 1
    %1198 = vsyncpa [#allocation13], 1
    %1199 = vsyncpa [#allocation5], 1

</llo_original>
